<compile_context>
chip_gen: v6e
topology: v6e:2x2x1
jax: 0.10.0
libtpu: 0.0.40
codegen_flags: <defaults>
</compile_context>

<pallas_src>
import jax
import jax.numpy as jnp
from jax.experimental import pallas as pl
from jax.experimental.pallas import tpu as pltpu


def _round_up(a, b):
    return ((a + b - 1) // b) * b


def _mlp_kernel(x_ref, w1_ref, b1_ref, w2_ref, b2_ref, w3_ref, b3_ref, o_ref):
    # x_ref : (TM, IN)            f32
    # w1_ref: (IN, H)   b1_ref: (1, H)        f32 (VPU path)
    # w2_ref: (H, H)    b2_ref: (1, H)        w2 in compute dtype (bf16), b2 f32
    # w3_ref: (H, OUTP) b3_ref: (1, OUTP)     w3 in compute dtype, OUTP lane-dense (128)
    # o_ref : (TM, OUTP)          f32
    in_f = x_ref.shape[1]
    hidden = w2_ref.shape[0]
    hc = 128 if hidden % 128 == 0 else hidden   # layer-2/3 fusion chunk width

    x = x_ref[...]
    w1 = w1_ref[...]

    # ---- layer 1 on the VPU: K = in_f (== 3) is far too shallow for the MXU ----
    h1 = x[:, 0:1] * w1[0:1, :]
    for f in range(1, in_f):
        h1 = h1 + x[:, f:f + 1] * w1[f:f + 1, :]
    h1 = jnp.maximum(h1 + b1_ref[...], 0.0)
    h1c = h1.astype(w2_ref.dtype)               # single cast; MXU operand dtype

    # ---- layers 2 + 3 fused over 128-wide hidden chunks (low vreg pressure) ----
    out = jnp.zeros(o_ref.shape, jnp.float32)
    for c in range(hidden // hc):
        lo = c * hc
        h2c = jnp.dot(h1c, w2_ref[:, lo:lo + hc],
                      preferred_element_type=jnp.float32)
        h2c = jnp.maximum(h2c + b2_ref[:, lo:lo + hc], 0.0)
        out = out + jnp.dot(h2c.astype(w3_ref.dtype), w3_ref[lo:lo + hc, :],
                            preferred_element_type=jnp.float32)
    out = out + b3_ref[...]
    o_ref[...] = out.astype(o_ref.dtype)


def vertex_deformer_forward(x, params, *, tm=None, compute_dtype=jnp.bfloat16):
    """x: (N, in_features) f32.  params: dict of w1,b1,w2,b2,w3,b3 (f32)."""
    N, in_f = x.shape
    hidden = params["w1"].shape[1]
    out_f = params["w3"].shape[1]

    # Row-tile selection: big tiles amortize the ~0.35us/step grid overhead,
    # but keep >= 2 grid steps when N allows (v7x dual TensorCore).
    if tm is None:
        tm = 512
        if N <= tm:
            tm = max(8, _round_up(pl.cdiv(N, 2), 8))
    tm = max(8, _round_up(tm, 8))

    n_pad = _round_up(N, tm)
    x_p = jnp.pad(x, ((0, n_pad - N), (0, 0))) if n_pad != N else x

    # Lane-dense output: pad the 3 output columns to 128 so stores are full-lane.
    out_pad = max(128, _round_up(out_f, 128))

    w1 = params["w1"].astype(jnp.float32)
    b1 = params["b1"].astype(jnp.float32).reshape(1, hidden)
    w2 = params["w2"].astype(compute_dtype)
    b2 = params["b2"].astype(jnp.float32).reshape(1, hidden)
    w3 = jnp.pad(params["w3"].astype(compute_dtype),
                 ((0, 0), (0, out_pad - out_f)))
    b3 = jnp.pad(params["b3"].astype(jnp.float32).reshape(1, out_f),
                 ((0, 0), (0, out_pad - out_f)))

    grid = (n_pad // tm,)

    in_specs = [
        pl.BlockSpec((tm, in_f), lambda i: (i, 0)),          # x tile
        pl.BlockSpec((in_f, hidden), lambda i: (0, 0)),      # w1 (full, resident)
        pl.BlockSpec((1, hidden), lambda i: (0, 0)),         # b1
        pl.BlockSpec((hidden, hidden), lambda i: (0, 0)),    # w2 (full, resident)
        pl.BlockSpec((1, hidden), lambda i: (0, 0)),         # b2
        pl.BlockSpec((hidden, out_pad), lambda i: (0, 0)),   # w3 (lane-padded)
        pl.BlockSpec((1, out_pad), lambda i: (0, 0)),        # b3 (lane-padded)
    ]
    out_specs = pl.BlockSpec((tm, out_pad), lambda i: (i, 0))

    cp_kwargs = dict(dimension_semantics=("parallel",))
    if tm >= 1024:
        # Headroom for very large row tiles; stays below v7x's 64 MiB VMEM.
        cp_kwargs["vmem_limit_bytes"] = 48 << 20

    out = pl.pallas_call(
        _mlp_kernel,
        out_shape=jax.ShapeDtypeStruct((n_pad, out_pad), jnp.float32),
        grid_spec=pltpu.PrefetchScalarGridSpec(
            num_scalar_prefetch=0,
            grid=grid,
            in_specs=in_specs,
            out_specs=out_specs,
        ),
        compiler_params=pltpu.CompilerParams(**cp_kwargs),
    )(x_p, w1, b1, w2, b2, w3, b3)

    return out[:N, :out_f]


def init_params(key, in_features=3, hidden_dim=256, out_features=3):
    """Deterministic synthetic init mimicking nn.Linear's uniform(-k, k)."""
    ks = jax.random.split(key, 6)

    def linear(kw, kb, fan_in, fan_out):
        bound = 1.0 / jnp.sqrt(jnp.float32(fan_in))
        # stored already transposed: (in, out), so kernel does x @ W
        w = jax.random.uniform(kw, (fan_in, fan_out), jnp.float32, -bound, bound)
        b = jax.random.uniform(kb, (1, fan_out), jnp.float32, -bound, bound)
        return w, b

    w1, b1 = linear(ks[0], ks[1], in_features, hidden_dim)
    w2, b2 = linear(ks[2], ks[3], hidden_dim, hidden_dim)
    w3, b3 = linear(ks[4], ks[5], hidden_dim, out_features)
    return {"w1": w1, "b1": b1, "w2": w2, "b2": b2, "w3": w3, "b3": b3}


def reference_f32(x, p):
    h1 = jnp.maximum(x @ p["w1"] + p["b1"], 0.0)
    h2 = jnp.maximum(h1 @ p["w2"] + p["b2"], 0.0)
    return h2 @ p["w3"] + p["b3"]


def reference_mirrored(x, p, compute_dtype=jnp.bfloat16):
    """Same math as the kernel (bf16 matmul operands, f32 accumulate/bias)."""
    w2 = p["w2"].astype(compute_dtype)
    w3 = p["w3"].astype(compute_dtype)
    h1 = jnp.maximum(x @ p["w1"] + p["b1"], 0.0).astype(compute_dtype)
    h2 = jnp.maximum(
        jnp.dot(h1, w2, preferred_element_type=jnp.float32) + p["b2"], 0.0
    ).astype(compute_dtype)
    return jnp.dot(h2, w3, preferred_element_type=jnp.float32) + p["b3"]


if __name__ == "__main__":
    key = jax.random.PRNGKey(0)
    k_x, k_p = jax.random.split(key)

    IN_FEATURES, HIDDEN, OUT_FEATURES = 3, 256, 3
    N_VERTICES = 512  # small demo; wrapper auto-picks tm=256 -> 2 grid steps

    x = jax.random.normal(k_x, (N_VERTICES, IN_FEATURES), jnp.float32)
    params = init_params(k_p, IN_FEATURES, HIDDEN, OUT_FEATURES)

    out = jax.block_until_ready(vertex_deformer_forward(x, params))
    assert out.shape == (N_VERTICES, OUT_FEATURES)

    ref_bf16 = reference_mirrored(x, params, jnp.bfloat16)
    ref_f32 = reference_f32(x, params)
    assert jnp.allclose(out, ref_bf16, atol=2e-2, rtol=2e-2), "mismatch vs mirrored ref"
    assert jnp.allclose(out, ref_f32, atol=1e-1, rtol=1e-1), "mismatch vs f32 ref"

    print("KERNEL_OK")
</pallas_src>

<mosaic_0001>
module attributes {stable_mosaic.version = 11 : i64} {
  func.func @_mlp_kernel(%arg0: i32, %arg1: memref<256x3xf32, #tpu.memory_space<vmem>>, %arg2: memref<3x256xf32, #tpu.memory_space<vmem>>, %arg3: memref<1x256xf32, #tpu.memory_space<vmem>>, %arg4: memref<256x256xbf16, #tpu.memory_space<vmem>>, %arg5: memref<1x256xf32, #tpu.memory_space<vmem>>, %arg6: memref<256x128xbf16, #tpu.memory_space<vmem>>, %arg7: memref<1x128xf32, #tpu.memory_space<vmem>>, %arg8: memref<256x128xf32, #tpu.memory_space<vmem>>) attributes {dimension_semantics = [#tpu.dimension_semantics<parallel>], iteration_bounds = array<i64: 2>, scalar_prefetch = 0 : i64, scratch_operands = 0 : i64, tpu.core_type = #tpu.core_type<tc>, window_params = [{transform_indices = @transform_0, window_bounds = array<i64: 256, 3>}, {pipeline_mode = #tpu.pipeline_mode<synchronous>, transform_indices = @transform_1, window_bounds = array<i64: 3, 256>}, {pipeline_mode = #tpu.pipeline_mode<synchronous>, transform_indices = @transform_2, window_bounds = array<i64: 1, 256>}, {pipeline_mode = #tpu.pipeline_mode<synchronous>, transform_indices = @transform_3, window_bounds = array<i64: 256, 256>}, {pipeline_mode = #tpu.pipeline_mode<synchronous>, transform_indices = @transform_4, window_bounds = array<i64: 1, 256>}, {pipeline_mode = #tpu.pipeline_mode<synchronous>, transform_indices = @transform_5, window_bounds = array<i64: 256, 128>}, {pipeline_mode = #tpu.pipeline_mode<synchronous>, transform_indices = @transform_6, window_bounds = array<i64: 1, 128>}, {transform_indices = @transform_7, window_bounds = array<i64: 256, 128>}]} {
    %c0 = arith.constant 0 : index
    %c0_0 = arith.constant 0 : index
    %0 = vector.load %arg1[%c0, %c0_0] : memref<256x3xf32, #tpu.memory_space<vmem>>, vector<256x3xf32>
    %c0_1 = arith.constant 0 : index
    %c0_2 = arith.constant 0 : index
    %1 = vector.load %arg2[%c0_1, %c0_2] : memref<3x256xf32, #tpu.memory_space<vmem>>, vector<3x256xf32>
    %2 = vector.extract_strided_slice %0 {offsets = [0, 0], sizes = [256, 1], strides = [1, 1]} : vector<256x3xf32> to vector<256x1xf32>
    %3 = vector.extract_strided_slice %1 {offsets = [0, 0], sizes = [1, 256], strides = [1, 1]} : vector<3x256xf32> to vector<1x256xf32>
    %4 = vector.broadcast %2 : vector<256x1xf32> to vector<256x256xf32>
    %5 = vector.broadcast %3 : vector<1x256xf32> to vector<256x256xf32>
    %6 = arith.mulf %4, %5 : vector<256x256xf32>
    %7 = vector.extract_strided_slice %0 {offsets = [0, 1], sizes = [256, 1], strides = [1, 1]} : vector<256x3xf32> to vector<256x1xf32>
    %8 = vector.extract_strided_slice %1 {offsets = [1, 0], sizes = [1, 256], strides = [1, 1]} : vector<3x256xf32> to vector<1x256xf32>
    %9 = vector.broadcast %7 : vector<256x1xf32> to vector<256x256xf32>
    %10 = vector.broadcast %8 : vector<1x256xf32> to vector<256x256xf32>
    %11 = arith.mulf %9, %10 : vector<256x256xf32>
    %12 = arith.addf %6, %11 : vector<256x256xf32>
    %13 = vector.extract_strided_slice %0 {offsets = [0, 2], sizes = [256, 1], strides = [1, 1]} : vector<256x3xf32> to vector<256x1xf32>
    %14 = vector.extract_strided_slice %1 {offsets = [2, 0], sizes = [1, 256], strides = [1, 1]} : vector<3x256xf32> to vector<1x256xf32>
    %15 = vector.broadcast %13 : vector<256x1xf32> to vector<256x256xf32>
    %16 = vector.broadcast %14 : vector<1x256xf32> to vector<256x256xf32>
    %17 = arith.mulf %15, %16 : vector<256x256xf32>
    %18 = arith.addf %12, %17 : vector<256x256xf32>
    %c0_3 = arith.constant 0 : index
    %c0_4 = arith.constant 0 : index
    %19 = vector.load %arg3[%c0_3, %c0_4] : memref<1x256xf32, #tpu.memory_space<vmem>>, vector<1x256xf32>
    %20 = vector.broadcast %19 : vector<1x256xf32> to vector<256x256xf32>
    %21 = arith.addf %18, %20 : vector<256x256xf32>
    %cst = arith.constant 0.000000e+00 : f32
    %22 = vector.broadcast %cst : f32 to vector<256x256xf32>
    %23 = arith.maximumf %21, %22 : vector<256x256xf32>
    %24 = arith.truncf %23 : vector<256x256xf32> to vector<256x256xbf16>
    %cst_5 = arith.constant 0.000000e+00 : f32
    %25 = vector.broadcast %cst_5 : f32 to vector<256x128xf32>
    %c0_6 = arith.constant 0 : index
    %c0_7 = arith.constant 0 : index
    %26 = vector.load %arg4[%c0_6, %c0_7] : memref<256x256xbf16, #tpu.memory_space<vmem>>, vector<256x128xbf16>
    %cst_8 = arith.constant dense<0.000000e+00> : vector<256x128xf32>
    %27 = tpu.matmul %24, %26, %cst_8 {dimension_numbers = #tpu.dot_dimension_numbers<[1], [0], [0], [1], [0, 0, 1, 1], [], []>} : vector<256x256xbf16>, vector<256x128xbf16>, vector<256x128xf32> -> vector<256x128xf32>
    %c0_9 = arith.constant 0 : index
    %c0_10 = arith.constant 0 : index
    %28 = vector.load %arg5[%c0_9, %c0_10] : memref<1x256xf32, #tpu.memory_space<vmem>>, vector<1x128xf32>
    %29 = vector.broadcast %28 : vector<1x128xf32> to vector<256x128xf32>
    %30 = arith.addf %27, %29 : vector<256x128xf32>
    %cst_11 = arith.constant 0.000000e+00 : f32
    %31 = vector.broadcast %cst_11 : f32 to vector<256x128xf32>
    %32 = arith.maximumf %30, %31 : vector<256x128xf32>
    %33 = arith.truncf %32 : vector<256x128xf32> to vector<256x128xbf16>
    %c0_12 = arith.constant 0 : index
    %c0_13 = arith.constant 0 : index
    %34 = vector.load %arg6[%c0_12, %c0_13] : memref<256x128xbf16, #tpu.memory_space<vmem>>, vector<128x128xbf16>
    %cst_14 = arith.constant dense<0.000000e+00> : vector<256x128xf32>
    %35 = tpu.matmul %33, %34, %cst_14 {dimension_numbers = #tpu.dot_dimension_numbers<[1], [0], [0], [1], [0, 0, 1, 1], [], []>} : vector<256x128xbf16>, vector<128x128xbf16>, vector<256x128xf32> -> vector<256x128xf32>
    %36 = arith.addf %25, %35 : vector<256x128xf32>
    %c0_15 = arith.constant 0 : index
    %c128 = arith.constant 128 : index
    %37 = vector.load %arg4[%c0_15, %c128] : memref<256x256xbf16, #tpu.memory_space<vmem>>, vector<256x128xbf16>
    %cst_16 = arith.constant dense<0.000000e+00> : vector<256x128xf32>
    %38 = tpu.matmul %24, %37, %cst_16 {dimension_numbers = #tpu.dot_dimension_numbers<[1], [0], [0], [1], [0, 0, 1, 1], [], []>} : vector<256x256xbf16>, vector<256x128xbf16>, vector<256x128xf32> -> vector<256x128xf32>
    %c0_17 = arith.constant 0 : index
    %c128_18 = arith.constant 128 : index
    %39 = vector.load %arg5[%c0_17, %c128_18] : memref<1x256xf32, #tpu.memory_space<vmem>>, vector<1x128xf32>
    %40 = vector.broadcast %39 : vector<1x128xf32> to vector<256x128xf32>
    %41 = arith.addf %38, %40 : vector<256x128xf32>
    %cst_19 = arith.constant 0.000000e+00 : f32
    %42 = vector.broadcast %cst_19 : f32 to vector<256x128xf32>
    %43 = arith.maximumf %41, %42 : vector<256x128xf32>
    %44 = arith.truncf %43 : vector<256x128xf32> to vector<256x128xbf16>
    %c128_20 = arith.constant 128 : index
    %c0_21 = arith.constant 0 : index
    %45 = vector.load %arg6[%c128_20, %c0_21] : memref<256x128xbf16, #tpu.memory_space<vmem>>, vector<128x128xbf16>
    %cst_22 = arith.constant dense<0.000000e+00> : vector<256x128xf32>
    %46 = tpu.matmul %44, %45, %cst_22 {dimension_numbers = #tpu.dot_dimension_numbers<[1], [0], [0], [1], [0, 0, 1, 1], [], []>} : vector<256x128xbf16>, vector<128x128xbf16>, vector<256x128xf32> -> vector<256x128xf32>
    %47 = arith.addf %36, %46 : vector<256x128xf32>
    %c0_23 = arith.constant 0 : index
    %c0_24 = arith.constant 0 : index
    %48 = vector.load %arg7[%c0_23, %c0_24] : memref<1x128xf32, #tpu.memory_space<vmem>>, vector<1x128xf32>
    %49 = vector.broadcast %48 : vector<1x128xf32> to vector<256x128xf32>
    %50 = arith.addf %47, %49 : vector<256x128xf32>
    %c0_25 = arith.constant 0 : index
    %c0_26 = arith.constant 0 : index
    %51 = vector.load %arg8[%c0_25, %c0_26] : memref<256x128xf32, #tpu.memory_space<vmem>>, vector<256x128xf32>
    tpu.vector_store %arg8[%c0_25, %c0_26], %50 {strides = array<i32>} : memref<256x128xf32, #tpu.memory_space<vmem>>, vector<256x128xf32>,
    return
  }
  func.func @transform_0(%arg0: i32) -> (i32, i32) {
    %c0_i32 = arith.constant 0 : i32
    %c0_i32_0 = arith.constant 0 : i32
    return %arg0, %c0_i32 : i32, i32
  }
  func.func @transform_1(%arg0: i32) -> (i32, i32) {
    %c0_i32 = arith.constant 0 : i32
    %c0_i32_0 = arith.constant 0 : i32
    %c0_i32_1 = arith.constant 0 : i32
    return %c0_i32, %c0_i32_0 : i32, i32
  }
  func.func @transform_2(%arg0: i32) -> (i32, i32) {
    %c0_i32 = arith.constant 0 : i32
    %c0_i32_0 = arith.constant 0 : i32
    %c0_i32_1 = arith.constant 0 : i32
    return %c0_i32, %c0_i32_0 : i32, i32
  }
  func.func @transform_3(%arg0: i32) -> (i32, i32) {
    %c0_i32 = arith.constant 0 : i32
    %c0_i32_0 = arith.constant 0 : i32
    %c0_i32_1 = arith.constant 0 : i32
    return %c0_i32, %c0_i32_0 : i32, i32
  }
  func.func @transform_4(%arg0: i32) -> (i32, i32) {
    %c0_i32 = arith.constant 0 : i32
    %c0_i32_0 = arith.constant 0 : i32
    %c0_i32_1 = arith.constant 0 : i32
    return %c0_i32, %c0_i32_0 : i32, i32
  }
  func.func @transform_5(%arg0: i32) -> (i32, i32) {
    %c0_i32 = arith.constant 0 : i32
    %c0_i32_0 = arith.constant 0 : i32
    %c0_i32_1 = arith.constant 0 : i32
    return %c0_i32, %c0_i32_0 : i32, i32
  }
  func.func @transform_6(%arg0: i32) -> (i32, i32) {
    %c0_i32 = arith.constant 0 : i32
    %c0_i32_0 = arith.constant 0 : i32
    %c0_i32_1 = arith.constant 0 : i32
    return %c0_i32, %c0_i32_0 : i32, i32
  }
  func.func @transform_7(%arg0: i32) -> (i32, i32) {
    %c0_i32 = arith.constant 0 : i32
    %c0_i32_0 = arith.constant 0 : i32
    return %arg0, %c0_i32 : i32, i32
  }
}

</mosaic_0001>

<llo_original>
// kernel: tpu_custom_call.1
$region0: #{tpu_custom_call.1}
  #allocation0 [shape = 'u32[]', space=smem, size = 0x4, offset = 0x4, fixed_abs, tag = 'smem constant byte address 0x4 - core index']
  #allocation1 [shape = 'u32[144,128]{1,0:T(1,128)}', space=vmem, size = 0x12000, scoped, tag = 'internal scratch']
  %s0 = inlined_call_operand.vmem [shape: f32[512,3], index: 0, kind: input, shape index: {}]
  %s1 = inlined_call_operand.vmem [shape: f32[3,256], index: 1, kind: input, shape index: {}]
  %s2 = inlined_call_operand.vmem [shape: f32[1,256], index: 2, kind: input, shape index: {}]
  %s3 = inlined_call_operand.vmem [shape: bf16[256,256], index: 3, kind: input, shape index: {}]
  %s4 = inlined_call_operand.vmem [shape: f32[1,256], index: 4, kind: input, shape index: {}]
  %s5 = inlined_call_operand.vmem [shape: bf16[256,128], index: 5, kind: input, shape index: {}]
  %s6 = inlined_call_operand.vmem [shape: f32[1,128], index: 6, kind: input, shape index: {}]
  %s7 = inlined_call_operand.hbm [shape: f32[512,128], index: 7, kind: output, shape index: {}]
  %s8 = sld [smem:[#allocation0]]
  $region61: #{tpu_custom_call.1} parent=0
    _
  %s10 = ssub.s32 1, %s8
  %s11 = scalar_select 0, %s10, %s8
  $region1: #{tpu_custom_call.1} parent=0
    #allocation2 [shape = 'u8[262144]{0}', space=vmem, size = 0x40000, scoped, tag = 'output window, operand 0']
    #allocation3 [shape = 's32[2]{0}', space=sflag, size = 0x8, scoped, tag = 'scoped memory for tpu_custom_call.1']
    %12 = vsyncpa [#allocation3], 0
    %s13 = scalar_lea.sflag [#allocation3], 1
    %14 = vsyncpa %s13, 0
    loop: start=0, step=1, limit=4
    $region2: #{tpu_custom_call.1} parent=1 // loop_pre_header
      _
    $region3: #{tpu_custom_call.1} parent=1 // loop_header
      %s16 = sphi 0, %s20
      %p17 = scmp.ge.s32.totalorder %s16, 4
      %s26 = sphi 0, %s28
      %s29 = sphi 0, %s26
      %s30 = sphi 0, %s29
      %s46 = sphi 0, %s30
      %s50 = sphi 0, %s50
      %s52 = sphi 0, %s50
      %s53 = sphi 0, %s52
      %s67 = sphi 0, %s53
      %s71 = sphi 0, %s71
      %s73 = sphi 0, %s71
      %s74 = sphi 0, %s73
      %s88 = sphi 0, %s74
      %s92 = sphi 0, %s92
      %s94 = sphi 0, %s92
      %s95 = sphi 0, %s94
      %s109 = sphi 0, %s95
      %s113 = sphi 0, %s113
      %s115 = sphi 0, %s113
      %s116 = sphi 0, %s115
      %s130 = sphi 0, %s116
      %s134 = sphi 0, %s134
      %s136 = sphi 0, %s134
      %s137 = sphi 0, %s136
      %s151 = sphi 0, %s137
      %s155 = sphi 0, %s155
      %s157 = sphi 0, %s155
      %s158 = sphi 0, %s157
      %s172 = sphi 0, %s158
      %s178 = sphi 0, %s180
      %s181 = sphi 0, %s178
      %s182 = sphi 0, %s181
      %s198 = sphi 0, %s182
    $region4: #{tpu_custom_call.1} parent=1 // loop_header_branch
      %19 = sbr.rel (%p17) target = $region8
    $region5: #{tpu_custom_call.1} parent=1 // loop_body
      %s21 = ssub.s32 %s16, 1
      %s22 = ssub.s32 %s16, 2
      %s23 = sadd.s32 %s16, 1
      %s24 = ssub.s32 %s16, %s23
      %p25 = scmp.eq.s32.totalorder %s24, 0
      %s27 = sadd.s32 %s26, 1
      %s28 = scalar_select %p25, %s26, %s27
      %p31 = pneg %p25
      %p32 = scmp.eq.s32.totalorder %s16, 1
      %p33 = por %p31, %p32
      %p34 = scmp.ne.s32.totalorder %s26, %s29
      %p35 = scmp.eq.s32.totalorder %s16, 0
      %p36 = por %p34, %p35
      %p37 = scmp.ne.s32.totalorder %s26, %s29
      %p38 = scmp.eq.s32.totalorder %s21, 1
      %p39 = por %p37, %p38
      %p40 = scmp.ne.s32.totalorder %s29, %s30
      %p41 = scmp.eq.s32.totalorder %s21, 0
      %p42 = por %p40, %p41
      %p43 = scmp.ne.s32.totalorder %s29, %s30
      %p44 = scmp.eq.s32.totalorder %s22, 1
      %p45 = por %p43, %p44
      %p47 = scmp.ne.s32.totalorder %s30, %s46
      %p48 = scmp.eq.s32.totalorder %s22, 0
      %p49 = por %p47, %p48
      %s51 = sadd.s32 %s50, 1
      %p54 = scmp.eq.s32.totalorder %s16, 1
      %p55 = scmp.ne.s32.totalorder %s50, %s52
      %p56 = scmp.eq.s32.totalorder %s16, 0
      %p57 = por %p55, %p56
      %p58 = scmp.ne.s32.totalorder %s50, %s52
      %p59 = scmp.eq.s32.totalorder %s21, 1
      %p60 = por %p58, %p59
      %p61 = scmp.ne.s32.totalorder %s52, %s53
      %p62 = scmp.eq.s32.totalorder %s21, 0
      %p63 = por %p61, %p62
      %p64 = scmp.ne.s32.totalorder %s52, %s53
      %p65 = scmp.eq.s32.totalorder %s22, 1
      %p66 = por %p64, %p65
      %p68 = scmp.ne.s32.totalorder %s53, %s67
      %p69 = scmp.eq.s32.totalorder %s22, 0
      %p70 = por %p68, %p69
      %s72 = sadd.s32 %s71, 1
      %p75 = scmp.eq.s32.totalorder %s16, 1
      %p76 = scmp.ne.s32.totalorder %s71, %s73
      %p77 = scmp.eq.s32.totalorder %s16, 0
      %p78 = por %p76, %p77
      %p79 = scmp.ne.s32.totalorder %s71, %s73
      %p80 = scmp.eq.s32.totalorder %s21, 1
      %p81 = por %p79, %p80
      %p82 = scmp.ne.s32.totalorder %s73, %s74
      %p83 = scmp.eq.s32.totalorder %s21, 0
      %p84 = por %p82, %p83
      %p85 = scmp.ne.s32.totalorder %s73, %s74
      %p86 = scmp.eq.s32.totalorder %s22, 1
      %p87 = por %p85, %p86
      %p89 = scmp.ne.s32.totalorder %s74, %s88
      %p90 = scmp.eq.s32.totalorder %s22, 0
      %p91 = por %p89, %p90
      %s93 = sadd.s32 %s92, 1
      %p96 = scmp.eq.s32.totalorder %s16, 1
      %p97 = scmp.ne.s32.totalorder %s92, %s94
      %p98 = scmp.eq.s32.totalorder %s16, 0
      %p99 = por %p97, %p98
      %p100 = scmp.ne.s32.totalorder %s92, %s94
      %p101 = scmp.eq.s32.totalorder %s21, 1
      %p102 = por %p100, %p101
      %p103 = scmp.ne.s32.totalorder %s94, %s95
      %p104 = scmp.eq.s32.totalorder %s21, 0
      %p105 = por %p103, %p104
      %p106 = scmp.ne.s32.totalorder %s94, %s95
      %p107 = scmp.eq.s32.totalorder %s22, 1
      %p108 = por %p106, %p107
      %p110 = scmp.ne.s32.totalorder %s95, %s109
      %p111 = scmp.eq.s32.totalorder %s22, 0
      %p112 = por %p110, %p111
      %s114 = sadd.s32 %s113, 1
      %p117 = scmp.eq.s32.totalorder %s16, 1
      %p118 = scmp.ne.s32.totalorder %s113, %s115
      %p119 = scmp.eq.s32.totalorder %s16, 0
      %p120 = por %p118, %p119
      %p121 = scmp.ne.s32.totalorder %s113, %s115
      %p122 = scmp.eq.s32.totalorder %s21, 1
      %p123 = por %p121, %p122
      %p124 = scmp.ne.s32.totalorder %s115, %s116
      %p125 = scmp.eq.s32.totalorder %s21, 0
      %p126 = por %p124, %p125
      %p127 = scmp.ne.s32.totalorder %s115, %s116
      %p128 = scmp.eq.s32.totalorder %s22, 1
      %p129 = por %p127, %p128
      %p131 = scmp.ne.s32.totalorder %s116, %s130
      %p132 = scmp.eq.s32.totalorder %s22, 0
      %p133 = por %p131, %p132
      %s135 = sadd.s32 %s134, 1
      %p138 = scmp.eq.s32.totalorder %s16, 1
      %p139 = scmp.ne.s32.totalorder %s134, %s136
      %p140 = scmp.eq.s32.totalorder %s16, 0
      %p141 = por %p139, %p140
      %p142 = scmp.ne.s32.totalorder %s134, %s136
      %p143 = scmp.eq.s32.totalorder %s21, 1
      %p144 = por %p142, %p143
      %p145 = scmp.ne.s32.totalorder %s136, %s137
      %p146 = scmp.eq.s32.totalorder %s21, 0
      %p147 = por %p145, %p146
      %p148 = scmp.ne.s32.totalorder %s136, %s137
      %p149 = scmp.eq.s32.totalorder %s22, 1
      %p150 = por %p148, %p149
      %p152 = scmp.ne.s32.totalorder %s137, %s151
      %p153 = scmp.eq.s32.totalorder %s22, 0
      %p154 = por %p152, %p153
      %s156 = sadd.s32 %s155, 1
      %p159 = scmp.eq.s32.totalorder %s16, 1
      %p160 = scmp.ne.s32.totalorder %s155, %s157
      %p161 = scmp.eq.s32.totalorder %s16, 0
      %p162 = por %p160, %p161
      %p163 = scmp.ne.s32.totalorder %s155, %s157
      %p164 = scmp.eq.s32.totalorder %s21, 1
      %p165 = por %p163, %p164
      %p166 = scmp.ne.s32.totalorder %s157, %s158
      %p167 = scmp.eq.s32.totalorder %s21, 0
      %p168 = por %p166, %p167
      %p169 = scmp.ne.s32.totalorder %s157, %s158
      %p170 = scmp.eq.s32.totalorder %s22, 1
      %p171 = por %p169, %p170
      %p173 = scmp.ne.s32.totalorder %s158, %s172
      %p174 = scmp.eq.s32.totalorder %s22, 0
      %p175 = por %p173, %p174
      %s176 = ssub.s32 %s16, %s23
      %p177 = scmp.eq.s32.totalorder %s176, 0
      %s179 = sadd.s32 %s178, 1
      %s180 = scalar_select %p177, %s178, %s179
      %p183 = pneg %p177
      %p184 = scmp.eq.s32.totalorder %s16, 1
      %p185 = por %p183, %p184
      %p186 = scmp.ne.s32.totalorder %s178, %s181
      %p187 = scmp.eq.s32.totalorder %s16, 0
      %p188 = por %p186, %p187
      %p189 = scmp.ne.s32.totalorder %s178, %s181
      %p190 = scmp.eq.s32.totalorder %s21, 1
      %p191 = por %p189, %p190
      %p192 = scmp.ne.s32.totalorder %s181, %s182
      %p193 = scmp.eq.s32.totalorder %s21, 0
      %p194 = por %p192, %p193
      %p195 = scmp.ne.s32.totalorder %s181, %s182
      %p196 = scmp.eq.s32.totalorder %s22, 1
      %p197 = por %p195, %p196
      %p199 = scmp.ne.s32.totalorder %s182, %s198
      %p200 = scmp.eq.s32.totalorder %s22, 0
      %p201 = por %p199, %p200
      %p202 = scmp.le.s32.totalorder 1, %s16
      %p203 = scmp.lt.s32.totalorder %s16, 3
      %p204 = pnand %p202, %p203
      %p205 = pneg %p204
      // Predicated region
      $region9: #{tpu_custom_call.1} parent=5 // pred_check
        _
      $region10: #{tpu_custom_call.1} parent=5 // pred_check_branch
        %207 = sbr.rel (%p204) target = $region12
      $region11: #{tpu_custom_call.1} parent=5 // pred_region
        %s208 = ssub.s32 %s16, 1
        // Predicated region
        $region13: #{tpu_custom_call.1} parent=11 // pred_check
          %p209 = pneg %p63
        $region14: #{tpu_custom_call.1} parent=11 // pred_check_branch
          %211 = sbr.rel (%p209) target = $region16
        $region15: #{tpu_custom_call.1} parent=11 // pred_region
          _
        $region16: #{tpu_custom_call.1} parent=11 // pred_fallthru
          _
        // Predicated region
        $region17: #{tpu_custom_call.1} parent=11 // pred_check
          %p212 = pneg %p84
        $region18: #{tpu_custom_call.1} parent=11 // pred_check_branch
          %214 = sbr.rel (%p212) target = $region20
        $region19: #{tpu_custom_call.1} parent=11 // pred_region
          _
        $region20: #{tpu_custom_call.1} parent=11 // pred_fallthru
          _
        // Predicated region
        $region21: #{tpu_custom_call.1} parent=11 // pred_check
          %p215 = pneg %p105
        $region22: #{tpu_custom_call.1} parent=11 // pred_check_branch
          %217 = sbr.rel (%p215) target = $region24
        $region23: #{tpu_custom_call.1} parent=11 // pred_region
          _
        $region24: #{tpu_custom_call.1} parent=11 // pred_fallthru
          _
        // Predicated region
        $region25: #{tpu_custom_call.1} parent=11 // pred_check
          %p218 = pneg %p126
        $region26: #{tpu_custom_call.1} parent=11 // pred_check_branch
          %220 = sbr.rel (%p218) target = $region28
        $region27: #{tpu_custom_call.1} parent=11 // pred_region
          _
        $region28: #{tpu_custom_call.1} parent=11 // pred_fallthru
          _
        // Predicated region
        $region29: #{tpu_custom_call.1} parent=11 // pred_check
          %p221 = pneg %p147
        $region30: #{tpu_custom_call.1} parent=11 // pred_check_branch
          %223 = sbr.rel (%p221) target = $region32
        $region31: #{tpu_custom_call.1} parent=11 // pred_region
          _
        $region32: #{tpu_custom_call.1} parent=11 // pred_fallthru
          _
        // Predicated region
        $region33: #{tpu_custom_call.1} parent=11 // pred_check
          %p224 = pneg %p168
        $region34: #{tpu_custom_call.1} parent=11 // pred_check_branch
          %226 = sbr.rel (%p224) target = $region36
        $region35: #{tpu_custom_call.1} parent=11 // pred_region
          _
        $region36: #{tpu_custom_call.1} parent=11 // pred_fallthru
          _
      $region12: #{tpu_custom_call.1} parent=5 // pred_fallthru
        _
      %p227 = scmp.lt.s32.totalorder %s16, 2
      // Predicated region
      $region37: #{tpu_custom_call.1} parent=5 // pred_check
        %p228 = pneg %p227
      $region38: #{tpu_custom_call.1} parent=5 // pred_check_branch
        %230 = sbr.rel (%p228) target = $region40
      $region39: #{tpu_custom_call.1} parent=5 // pred_region
        // Predicated region
        $region41: #{tpu_custom_call.1} parent=39 // pred_check
          %p231 = pneg %p36
        $region42: #{tpu_custom_call.1} parent=39 // pred_check_branch
          %233 = sbr.rel (%p231) target = $region44
        $region43: #{tpu_custom_call.1} parent=39 // pred_region
          %s234 = smul.u32 32, %s16
          %p235 = scmp.lt.s32.totalorder %s234, 63
          %s236 = scalar_select %p235, %s234, 63
          %s237 = smul.addr %s236, 8
          %s238 = scalar_lea.vmem %s0, %s237
          %s239 = smul.u32 32, %s16
        $region44: #{tpu_custom_call.1} parent=39 // pred_fallthru
          _
      $region40: #{tpu_custom_call.1} parent=5 // pred_fallthru
        _
      %p240 = scmp.le.s32.totalorder 1, %s16
      %p241 = scmp.lt.s32.totalorder %s16, 3
      %p242 = pnand %p240, %p241
      %p243 = pneg %p242
      // Predicated region
      $region45: #{tpu_custom_call.1} parent=5 // pred_check
        _
      $region46: #{tpu_custom_call.1} parent=5 // pred_check_branch
        %245 = sbr.rel (%p242) target = $region48
      $region47: #{tpu_custom_call.1} parent=5 // pred_region
        %s246 = ssub.s32 %s16, 1
        %s247 = smul.u32 32, %s21
        %p248 = scmp.lt.s32.totalorder %s247, 63
        %s249 = scalar_select %p248, %s247, 63
        %s250 = smul.addr %s249, 8
        %s251 = scalar_lea.vmem %s0, %s250
        %p252 = pneg %p42
        %p253 = pneg %p39
        %p254 = pneg %p63
        %p255 = pneg %p60
        %p256 = pneg %p84
        %p257 = pneg %p81
        %p258 = pneg %p105
        %p259 = pneg %p102
        %p260 = pneg %p126
        %p261 = pneg %p123
        %p262 = pneg %p147
        %p263 = pneg %p144
        %p264 = pneg %p168
        %p265 = pneg %p165
        %p266 = pneg %p194
        %p267 = pneg %p191
        %s268 = sand.u32 %s181, 1
        %s269 = scalar_lea.sflag [#allocation3], %s268
        %s270 = sand.u32 %s181, 1
        %s271 = smul.addr %s270, 256
        %s272 = scalar_lea.vmem [#allocation2], %s271
        %s273 = smul.u32 32, %s21
        %p274 = scmp.lt.s32.totalorder %s273, 63
        %s275 = scalar_select %p274, %s273, 63
        %s276 = smul.addr %s275, 8
        %s277 = scalar_lea.vmem %s0, %s276
        %s278 = smul.u32 32, %s21
        %s279 = smul.u32 32, %s21
        %v281 = vld [vmem:[%s277] sm:$0xff]
        %v282 = vld [vmem:[%s277 + $0x8] sm:$0xff]
        %v283 = vld [vmem:[%s277 + $0x10] sm:$0xff]
        %v284 = vld [vmem:[%s277 + $0x18] sm:$0xff]
        %v285 = vld [vmem:[%s277 + $0x20] sm:$0xff]
        %v286 = vld [vmem:[%s277 + $0x28] sm:$0xff]
        %v287 = vld [vmem:[%s277 + $0x30] sm:$0xff]
        %v288 = vld [vmem:[%s277 + $0x38] sm:$0xff]
        %v289 = vld [vmem:[%s277 + $0x40] sm:$0xff]
        %v290 = vld [vmem:[%s277 + $0x48] sm:$0xff]
        %v291 = vld [vmem:[%s277 + $0x50] sm:$0xff]
        %v292 = vld [vmem:[%s277 + $0x58] sm:$0xff]
        %v293 = vld [vmem:[%s277 + $0x60] sm:$0xff]
        %v294 = vld [vmem:[%s277 + $0x68] sm:$0xff]
        %v295 = vld [vmem:[%s277 + $0x70] sm:$0xff]
        %v296 = vld [vmem:[%s277 + $0x78] sm:$0xff]
        %v297 = vld [vmem:[%s277 + $0x80] sm:$0xff]
        %v298 = vld [vmem:[%s277 + $0x88] sm:$0xff]
        %v299 = vld [vmem:[%s277 + $0x90] sm:$0xff]
        %v300 = vld [vmem:[%s277 + $0x98] sm:$0xff]
        %v301 = vld [vmem:[%s277 + $0xa0] sm:$0xff]
        %v302 = vld [vmem:[%s277 + $0xa8] sm:$0xff]
        %v303 = vld [vmem:[%s277 + $0xb0] sm:$0xff]
        %v304 = vld [vmem:[%s277 + $0xb8] sm:$0xff]
        %v305 = vld [vmem:[%s277 + $0xc0] sm:$0xff]
        %v306 = vld [vmem:[%s277 + $0xc8] sm:$0xff]
        %v307 = vld [vmem:[%s277 + $0xd0] sm:$0xff]
        %v308 = vld [vmem:[%s277 + $0xd8] sm:$0xff]
        %v309 = vld [vmem:[%s277 + $0xe0] sm:$0xff]
        %v310 = vld [vmem:[%s277 + $0xe8] sm:$0xff]
        %v311 = vld [vmem:[%s277 + $0xf0] sm:$0xff]
        %v312 = vld [vmem:[%s277 + $0xf8] sm:$0xff]
        %v313 = vld [vmem:[%s1] sm:$0x77]
        %315 = vset.pattern.permute.xlu0 0
        %316 = vperm.xlu0 %315, %v281
        %v317 = vpop.permute.xlu0 %316
        %320 = vset.pattern.permute.xlu0 0
        %321 = vperm.xlu0 %320, %v282
        %v322 = vpop.permute.xlu0 %321
        %325 = vset.pattern.permute.xlu0 0
        %326 = vperm.xlu0 %325, %v283
        %v327 = vpop.permute.xlu0 %326
        %330 = vset.pattern.permute.xlu0 0
        %331 = vperm.xlu0 %330, %v284
        %v332 = vpop.permute.xlu0 %331
        %335 = vset.pattern.permute.xlu0 0
        %336 = vperm.xlu0 %335, %v285
        %v337 = vpop.permute.xlu0 %336
        %340 = vset.pattern.permute.xlu0 0
        %341 = vperm.xlu0 %340, %v286
        %v342 = vpop.permute.xlu0 %341
        %345 = vset.pattern.permute.xlu0 0
        %346 = vperm.xlu0 %345, %v287
        %v347 = vpop.permute.xlu0 %346
        %350 = vset.pattern.permute.xlu0 0
        %351 = vperm.xlu0 %350, %v288
        %v352 = vpop.permute.xlu0 %351
        %355 = vset.pattern.permute.xlu0 0
        %356 = vperm.xlu0 %355, %v289
        %v357 = vpop.permute.xlu0 %356
        %360 = vset.pattern.permute.xlu0 0
        %361 = vperm.xlu0 %360, %v290
        %v362 = vpop.permute.xlu0 %361
        %365 = vset.pattern.permute.xlu0 0
        %366 = vperm.xlu0 %365, %v291
        %v367 = vpop.permute.xlu0 %366
        %370 = vset.pattern.permute.xlu0 0
        %371 = vperm.xlu0 %370, %v292
        %v372 = vpop.permute.xlu0 %371
        %375 = vset.pattern.permute.xlu0 0
        %376 = vperm.xlu0 %375, %v293
        %v377 = vpop.permute.xlu0 %376
        %380 = vset.pattern.permute.xlu0 0
        %381 = vperm.xlu0 %380, %v294
        %v382 = vpop.permute.xlu0 %381
        %385 = vset.pattern.permute.xlu0 0
        %386 = vperm.xlu0 %385, %v295
        %v387 = vpop.permute.xlu0 %386
        %390 = vset.pattern.permute.xlu0 0
        %391 = vperm.xlu0 %390, %v296
        %v392 = vpop.permute.xlu0 %391
        %395 = vset.pattern.permute.xlu0 0
        %396 = vperm.xlu0 %395, %v297
        %v397 = vpop.permute.xlu0 %396
        %400 = vset.pattern.permute.xlu0 0
        %401 = vperm.xlu0 %400, %v298
        %v402 = vpop.permute.xlu0 %401
        %405 = vset.pattern.permute.xlu0 0
        %406 = vperm.xlu0 %405, %v299
        %v407 = vpop.permute.xlu0 %406
        %410 = vset.pattern.permute.xlu0 0
        %411 = vperm.xlu0 %410, %v300
        %v412 = vpop.permute.xlu0 %411
        %415 = vset.pattern.permute.xlu0 0
        %416 = vperm.xlu0 %415, %v301
        %v417 = vpop.permute.xlu0 %416
        %420 = vset.pattern.permute.xlu0 0
        %421 = vperm.xlu0 %420, %v302
        %v422 = vpop.permute.xlu0 %421
        %425 = vset.pattern.permute.xlu0 0
        %426 = vperm.xlu0 %425, %v303
        %v427 = vpop.permute.xlu0 %426
        %430 = vset.pattern.permute.xlu0 0
        %431 = vperm.xlu0 %430, %v304
        %v432 = vpop.permute.xlu0 %431
        %435 = vset.pattern.permute.xlu0 0
        %436 = vperm.xlu0 %435, %v305
        %v437 = vpop.permute.xlu0 %436
        %440 = vset.pattern.permute.xlu0 0
        %441 = vperm.xlu0 %440, %v306
        %v442 = vpop.permute.xlu0 %441
        %445 = vset.pattern.permute.xlu0 0
        %446 = vperm.xlu0 %445, %v307
        %v447 = vpop.permute.xlu0 %446
        %450 = vset.pattern.permute.xlu0 0
        %451 = vperm.xlu0 %450, %v308
        %v452 = vpop.permute.xlu0 %451
        %455 = vset.pattern.permute.xlu0 0
        %456 = vperm.xlu0 %455, %v309
        %v457 = vpop.permute.xlu0 %456
        %460 = vset.pattern.permute.xlu0 0
        %461 = vperm.xlu0 %460, %v310
        %v462 = vpop.permute.xlu0 %461
        %465 = vset.pattern.permute.xlu0 0
        %466 = vperm.xlu0 %465, %v311
        %v467 = vpop.permute.xlu0 %466
        %470 = vset.pattern.permute.xlu0 0
        %471 = vperm.xlu0 %470, %v312
        %v472 = vpop.permute.xlu0 %471
        %v475 = vlaneseq
        %v476 = vshrl.u32 %v475, 7
        %v477 = vsub.s32 0, %v476
        %v478 = vrot.slane %v313, %v477
        %v479 = vlaneseq
        %v480 = vshrl.u32 %v479, 7
        %v481 = vsub.s32 4, %v480
        %v482 = vrot.slane %v313, %v481
        %v485 = vlaneseq
        %v486 = vshrl.u32 %v485, 7
        %v487 = vsub.s32 0, %v486
        %v488 = vrot.slane %v478, %v487
        %v489 = vlaneseq
        %v490 = vshrl.u32 %v489, 7
        %v491 = vsub.s32 0, %v490
        %v492 = vrot.slane %v482, %v491
        %v493 = vmul.f32 %v317, %v488
        %v494 = vmul.f32 %v317, %v492
        %v495 = vmul.f32 %v322, %v488
        %v496 = vmul.f32 %v322, %v492
        %v497 = vmul.f32 %v327, %v488
        %v498 = vmul.f32 %v327, %v492
        %v499 = vmul.f32 %v332, %v488
        %v500 = vmul.f32 %v332, %v492
        %v501 = vmul.f32 %v337, %v488
        %v502 = vmul.f32 %v337, %v492
        %v503 = vmul.f32 %v342, %v488
        %v504 = vmul.f32 %v342, %v492
        %v505 = vmul.f32 %v347, %v488
        %v506 = vmul.f32 %v347, %v492
        %v507 = vmul.f32 %v352, %v488
        %v508 = vmul.f32 %v352, %v492
        %v509 = vmul.f32 %v357, %v488
        %v510 = vmul.f32 %v357, %v492
        %v511 = vmul.f32 %v362, %v488
        %v512 = vmul.f32 %v362, %v492
        %v513 = vmul.f32 %v367, %v488
        %v514 = vmul.f32 %v367, %v492
        %v515 = vmul.f32 %v372, %v488
        %v516 = vmul.f32 %v372, %v492
        %v517 = vmul.f32 %v377, %v488
        %v518 = vmul.f32 %v377, %v492
        %v519 = vmul.f32 %v382, %v488
        %v520 = vmul.f32 %v382, %v492
        %v521 = vmul.f32 %v387, %v488
        %v522 = vmul.f32 %v387, %v492
        %v523 = vmul.f32 %v392, %v488
        %v524 = vmul.f32 %v392, %v492
        %v525 = vmul.f32 %v397, %v488
        %v526 = vmul.f32 %v397, %v492
        %v527 = vmul.f32 %v402, %v488
        %v528 = vmul.f32 %v402, %v492
        %v529 = vmul.f32 %v407, %v488
        %v530 = vmul.f32 %v407, %v492
        %v531 = vmul.f32 %v412, %v488
        %v532 = vmul.f32 %v412, %v492
        %v533 = vmul.f32 %v417, %v488
        %v534 = vmul.f32 %v417, %v492
        %v535 = vmul.f32 %v422, %v488
        %v536 = vmul.f32 %v422, %v492
        %v537 = vmul.f32 %v427, %v488
        %v538 = vmul.f32 %v427, %v492
        %v539 = vmul.f32 %v432, %v488
        %v540 = vmul.f32 %v432, %v492
        %v541 = vmul.f32 %v437, %v488
        %v542 = vmul.f32 %v437, %v492
        %v543 = vmul.f32 %v442, %v488
        %v544 = vmul.f32 %v442, %v492
        %v545 = vmul.f32 %v447, %v488
        %v546 = vmul.f32 %v447, %v492
        %v547 = vmul.f32 %v452, %v488
        %v548 = vmul.f32 %v452, %v492
        %v549 = vmul.f32 %v457, %v488
        %v550 = vmul.f32 %v457, %v492
        %v551 = vmul.f32 %v462, %v488
        %v552 = vmul.f32 %v462, %v492
        %v553 = vmul.f32 %v467, %v488
        %v554 = vmul.f32 %v467, %v492
        %v555 = vmul.f32 %v472, %v488
        %v556 = vmul.f32 %v472, %v492
        %557 = vset.pattern.permute.xlu0 1
        %558 = vperm.xlu0 %557, %v281
        %v559 = vpop.permute.xlu0 %558
        %561 = vset.pattern.permute.xlu0 1
        %562 = vperm.xlu0 %561, %v282
        %v563 = vpop.permute.xlu0 %562
        %565 = vset.pattern.permute.xlu0 1
        %566 = vperm.xlu0 %565, %v283
        %v567 = vpop.permute.xlu0 %566
        %569 = vset.pattern.permute.xlu0 1
        %570 = vperm.xlu0 %569, %v284
        %v571 = vpop.permute.xlu0 %570
        %573 = vset.pattern.permute.xlu0 1
        %574 = vperm.xlu0 %573, %v285
        %v575 = vpop.permute.xlu0 %574
        %577 = vset.pattern.permute.xlu0 1
        %578 = vperm.xlu0 %577, %v286
        %v579 = vpop.permute.xlu0 %578
        %581 = vset.pattern.permute.xlu0 1
        %582 = vperm.xlu0 %581, %v287
        %v583 = vpop.permute.xlu0 %582
        %585 = vset.pattern.permute.xlu0 1
        %586 = vperm.xlu0 %585, %v288
        %v587 = vpop.permute.xlu0 %586
        %589 = vset.pattern.permute.xlu0 1
        %590 = vperm.xlu0 %589, %v289
        %v591 = vpop.permute.xlu0 %590
        %593 = vset.pattern.permute.xlu0 1
        %594 = vperm.xlu0 %593, %v290
        %v595 = vpop.permute.xlu0 %594
        %597 = vset.pattern.permute.xlu0 1
        %598 = vperm.xlu0 %597, %v291
        %v599 = vpop.permute.xlu0 %598
        %601 = vset.pattern.permute.xlu0 1
        %602 = vperm.xlu0 %601, %v292
        %v603 = vpop.permute.xlu0 %602
        %605 = vset.pattern.permute.xlu0 1
        %606 = vperm.xlu0 %605, %v293
        %v607 = vpop.permute.xlu0 %606
        %609 = vset.pattern.permute.xlu0 1
        %610 = vperm.xlu0 %609, %v294
        %v611 = vpop.permute.xlu0 %610
        %613 = vset.pattern.permute.xlu0 1
        %614 = vperm.xlu0 %613, %v295
        %v615 = vpop.permute.xlu0 %614
        %617 = vset.pattern.permute.xlu0 1
        %618 = vperm.xlu0 %617, %v296
        %v619 = vpop.permute.xlu0 %618
        %621 = vset.pattern.permute.xlu0 1
        %622 = vperm.xlu0 %621, %v297
        %v623 = vpop.permute.xlu0 %622
        %625 = vset.pattern.permute.xlu0 1
        %626 = vperm.xlu0 %625, %v298
        %v627 = vpop.permute.xlu0 %626
        %629 = vset.pattern.permute.xlu0 1
        %630 = vperm.xlu0 %629, %v299
        %v631 = vpop.permute.xlu0 %630
        %633 = vset.pattern.permute.xlu0 1
        %634 = vperm.xlu0 %633, %v300
        %v635 = vpop.permute.xlu0 %634
        %637 = vset.pattern.permute.xlu0 1
        %638 = vperm.xlu0 %637, %v301
        %v639 = vpop.permute.xlu0 %638
        %641 = vset.pattern.permute.xlu0 1
        %642 = vperm.xlu0 %641, %v302
        %v643 = vpop.permute.xlu0 %642
        %645 = vset.pattern.permute.xlu0 1
        %646 = vperm.xlu0 %645, %v303
        %v647 = vpop.permute.xlu0 %646
        %649 = vset.pattern.permute.xlu0 1
        %650 = vperm.xlu0 %649, %v304
        %v651 = vpop.permute.xlu0 %650
        %653 = vset.pattern.permute.xlu0 1
        %654 = vperm.xlu0 %653, %v305
        %v655 = vpop.permute.xlu0 %654
        %657 = vset.pattern.permute.xlu0 1
        %658 = vperm.xlu0 %657, %v306
        %v659 = vpop.permute.xlu0 %658
        %661 = vset.pattern.permute.xlu0 1
        %662 = vperm.xlu0 %661, %v307
        %v663 = vpop.permute.xlu0 %662
        %665 = vset.pattern.permute.xlu0 1
        %666 = vperm.xlu0 %665, %v308
        %v667 = vpop.permute.xlu0 %666
        %669 = vset.pattern.permute.xlu0 1
        %670 = vperm.xlu0 %669, %v309
        %v671 = vpop.permute.xlu0 %670
        %673 = vset.pattern.permute.xlu0 1
        %674 = vperm.xlu0 %673, %v310
        %v675 = vpop.permute.xlu0 %674
        %677 = vset.pattern.permute.xlu0 1
        %678 = vperm.xlu0 %677, %v311
        %v679 = vpop.permute.xlu0 %678
        %681 = vset.pattern.permute.xlu0 1
        %682 = vperm.xlu0 %681, %v312
        %v683 = vpop.permute.xlu0 %682
        %v685 = vlaneseq
        %v686 = vshrl.u32 %v685, 7
        %v687 = vsub.s32 1, %v686
        %v688 = vrot.slane %v313, %v687
        %v689 = vlaneseq
        %v690 = vshrl.u32 %v689, 7
        %v691 = vsub.s32 5, %v690
        %v692 = vrot.slane %v313, %v691
        %v695 = vlaneseq
        %v696 = vshrl.u32 %v695, 7
        %v697 = vsub.s32 1, %v696
        %v698 = vrot.slane %v688, %v697
        %v699 = vlaneseq
        %v700 = vshrl.u32 %v699, 7
        %v701 = vsub.s32 1, %v700
        %v702 = vrot.slane %v692, %v701
        %v703 = vmul.f32 %v559, %v698
        %v704 = vmul.f32 %v559, %v702
        %v705 = vmul.f32 %v563, %v698
        %v706 = vmul.f32 %v563, %v702
        %v707 = vmul.f32 %v567, %v698
        %v708 = vmul.f32 %v567, %v702
        %v709 = vmul.f32 %v571, %v698
        %v710 = vmul.f32 %v571, %v702
        %v711 = vmul.f32 %v575, %v698
        %v712 = vmul.f32 %v575, %v702
        %v713 = vmul.f32 %v579, %v698
        %v714 = vmul.f32 %v579, %v702
        %v715 = vmul.f32 %v583, %v698
        %v716 = vmul.f32 %v583, %v702
        %v717 = vmul.f32 %v587, %v698
        %v718 = vmul.f32 %v587, %v702
        %v719 = vmul.f32 %v591, %v698
        %v720 = vmul.f32 %v591, %v702
        %v721 = vmul.f32 %v595, %v698
        %v722 = vmul.f32 %v595, %v702
        %v723 = vmul.f32 %v599, %v698
        %v724 = vmul.f32 %v599, %v702
        %v725 = vmul.f32 %v603, %v698
        %v726 = vmul.f32 %v603, %v702
        %v727 = vmul.f32 %v607, %v698
        %v728 = vmul.f32 %v607, %v702
        %v729 = vmul.f32 %v611, %v698
        %v730 = vmul.f32 %v611, %v702
        %v731 = vmul.f32 %v615, %v698
        %v732 = vmul.f32 %v615, %v702
        %v733 = vmul.f32 %v619, %v698
        %v734 = vmul.f32 %v619, %v702
        %v735 = vmul.f32 %v623, %v698
        %v736 = vmul.f32 %v623, %v702
        %v737 = vmul.f32 %v627, %v698
        %v738 = vmul.f32 %v627, %v702
        %v739 = vmul.f32 %v631, %v698
        %v740 = vmul.f32 %v631, %v702
        %v741 = vmul.f32 %v635, %v698
        %v742 = vmul.f32 %v635, %v702
        %v743 = vmul.f32 %v639, %v698
        %v744 = vmul.f32 %v639, %v702
        %v745 = vmul.f32 %v643, %v698
        %v746 = vmul.f32 %v643, %v702
        %v747 = vmul.f32 %v647, %v698
        %v748 = vmul.f32 %v647, %v702
        %v749 = vmul.f32 %v651, %v698
        %v750 = vmul.f32 %v651, %v702
        %v751 = vmul.f32 %v655, %v698
        %v752 = vmul.f32 %v655, %v702
        %v753 = vmul.f32 %v659, %v698
        %v754 = vmul.f32 %v659, %v702
        %v755 = vmul.f32 %v663, %v698
        %v756 = vmul.f32 %v663, %v702
        %v757 = vmul.f32 %v667, %v698
        %v758 = vmul.f32 %v667, %v702
        %v759 = vmul.f32 %v671, %v698
        %v760 = vmul.f32 %v671, %v702
        %v761 = vmul.f32 %v675, %v698
        %v762 = vmul.f32 %v675, %v702
        %v763 = vmul.f32 %v679, %v698
        %v764 = vmul.f32 %v679, %v702
        %v765 = vmul.f32 %v683, %v698
        %v766 = vmul.f32 %v683, %v702
        %v767 = vadd.f32 %v493, %v703
        %v768 = vadd.f32 %v494, %v704
        %v769 = vadd.f32 %v495, %v705
        %v770 = vadd.f32 %v496, %v706
        %v771 = vadd.f32 %v497, %v707
        %v772 = vadd.f32 %v498, %v708
        %v773 = vadd.f32 %v499, %v709
        %v774 = vadd.f32 %v500, %v710
        %v775 = vadd.f32 %v501, %v711
        %v776 = vadd.f32 %v502, %v712
        %v777 = vadd.f32 %v503, %v713
        %v778 = vadd.f32 %v504, %v714
        %v779 = vadd.f32 %v505, %v715
        %v780 = vadd.f32 %v506, %v716
        %v781 = vadd.f32 %v507, %v717
        %v782 = vadd.f32 %v508, %v718
        %v783 = vadd.f32 %v509, %v719
        %v784 = vadd.f32 %v510, %v720
        %v785 = vadd.f32 %v511, %v721
        %v786 = vadd.f32 %v512, %v722
        %v787 = vadd.f32 %v513, %v723
        %v788 = vadd.f32 %v514, %v724
        %v789 = vadd.f32 %v515, %v725
        %v790 = vadd.f32 %v516, %v726
        %v791 = vadd.f32 %v517, %v727
        %v792 = vadd.f32 %v518, %v728
        %v793 = vadd.f32 %v519, %v729
        %v794 = vadd.f32 %v520, %v730
        %v795 = vadd.f32 %v521, %v731
        %v796 = vadd.f32 %v522, %v732
        %v797 = vadd.f32 %v523, %v733
        %v798 = vadd.f32 %v524, %v734
        %v799 = vadd.f32 %v525, %v735
        %v800 = vadd.f32 %v526, %v736
        %v801 = vadd.f32 %v527, %v737
        %v802 = vadd.f32 %v528, %v738
        %v803 = vadd.f32 %v529, %v739
        %v804 = vadd.f32 %v530, %v740
        %v805 = vadd.f32 %v531, %v741
        %v806 = vadd.f32 %v532, %v742
        %v807 = vadd.f32 %v533, %v743
        %v808 = vadd.f32 %v534, %v744
        %v809 = vadd.f32 %v535, %v745
        %v810 = vadd.f32 %v536, %v746
        %v811 = vadd.f32 %v537, %v747
        %v812 = vadd.f32 %v538, %v748
        %v813 = vadd.f32 %v539, %v749
        %v814 = vadd.f32 %v540, %v750
        %v815 = vadd.f32 %v541, %v751
        %v816 = vadd.f32 %v542, %v752
        %v817 = vadd.f32 %v543, %v753
        %v818 = vadd.f32 %v544, %v754
        %v819 = vadd.f32 %v545, %v755
        %v820 = vadd.f32 %v546, %v756
        %v821 = vadd.f32 %v547, %v757
        %v822 = vadd.f32 %v548, %v758
        %v823 = vadd.f32 %v549, %v759
        %v824 = vadd.f32 %v550, %v760
        %v825 = vadd.f32 %v551, %v761
        %v826 = vadd.f32 %v552, %v762
        %v827 = vadd.f32 %v553, %v763
        %v828 = vadd.f32 %v554, %v764
        %v829 = vadd.f32 %v555, %v765
        %v830 = vadd.f32 %v556, %v766
        %831 = vset.pattern.permute.xlu0 2
        %832 = vperm.xlu0 %831, %v281
        %v833 = vpop.permute.xlu0 %832
        %835 = vset.pattern.permute.xlu0 2
        %836 = vperm.xlu0 %835, %v282
        %v837 = vpop.permute.xlu0 %836
        %839 = vset.pattern.permute.xlu0 2
        %840 = vperm.xlu0 %839, %v283
        %v841 = vpop.permute.xlu0 %840
        %843 = vset.pattern.permute.xlu0 2
        %844 = vperm.xlu0 %843, %v284
        %v845 = vpop.permute.xlu0 %844
        %847 = vset.pattern.permute.xlu0 2
        %848 = vperm.xlu0 %847, %v285
        %v849 = vpop.permute.xlu0 %848
        %851 = vset.pattern.permute.xlu0 2
        %852 = vperm.xlu0 %851, %v286
        %v853 = vpop.permute.xlu0 %852
        %855 = vset.pattern.permute.xlu0 2
        %856 = vperm.xlu0 %855, %v287
        %v857 = vpop.permute.xlu0 %856
        %859 = vset.pattern.permute.xlu0 2
        %860 = vperm.xlu0 %859, %v288
        %v861 = vpop.permute.xlu0 %860
        %863 = vset.pattern.permute.xlu0 2
        %864 = vperm.xlu0 %863, %v289
        %v865 = vpop.permute.xlu0 %864
        %867 = vset.pattern.permute.xlu0 2
        %868 = vperm.xlu0 %867, %v290
        %v869 = vpop.permute.xlu0 %868
        %871 = vset.pattern.permute.xlu0 2
        %872 = vperm.xlu0 %871, %v291
        %v873 = vpop.permute.xlu0 %872
        %875 = vset.pattern.permute.xlu0 2
        %876 = vperm.xlu0 %875, %v292
        %v877 = vpop.permute.xlu0 %876
        %879 = vset.pattern.permute.xlu0 2
        %880 = vperm.xlu0 %879, %v293
        %v881 = vpop.permute.xlu0 %880
        %883 = vset.pattern.permute.xlu0 2
        %884 = vperm.xlu0 %883, %v294
        %v885 = vpop.permute.xlu0 %884
        %887 = vset.pattern.permute.xlu0 2
        %888 = vperm.xlu0 %887, %v295
        %v889 = vpop.permute.xlu0 %888
        %891 = vset.pattern.permute.xlu0 2
        %892 = vperm.xlu0 %891, %v296
        %v893 = vpop.permute.xlu0 %892
        %895 = vset.pattern.permute.xlu0 2
        %896 = vperm.xlu0 %895, %v297
        %v897 = vpop.permute.xlu0 %896
        %899 = vset.pattern.permute.xlu0 2
        %900 = vperm.xlu0 %899, %v298
        %v901 = vpop.permute.xlu0 %900
        %903 = vset.pattern.permute.xlu0 2
        %904 = vperm.xlu0 %903, %v299
        %v905 = vpop.permute.xlu0 %904
        %907 = vset.pattern.permute.xlu0 2
        %908 = vperm.xlu0 %907, %v300
        %v909 = vpop.permute.xlu0 %908
        %911 = vset.pattern.permute.xlu0 2
        %912 = vperm.xlu0 %911, %v301
        %v913 = vpop.permute.xlu0 %912
        %915 = vset.pattern.permute.xlu0 2
        %916 = vperm.xlu0 %915, %v302
        %v917 = vpop.permute.xlu0 %916
        %919 = vset.pattern.permute.xlu0 2
        %920 = vperm.xlu0 %919, %v303
        %v921 = vpop.permute.xlu0 %920
        %923 = vset.pattern.permute.xlu0 2
        %924 = vperm.xlu0 %923, %v304
        %v925 = vpop.permute.xlu0 %924
        %927 = vset.pattern.permute.xlu0 2
        %928 = vperm.xlu0 %927, %v305
        %v929 = vpop.permute.xlu0 %928
        %931 = vset.pattern.permute.xlu0 2
        %932 = vperm.xlu0 %931, %v306
        %v933 = vpop.permute.xlu0 %932
        %935 = vset.pattern.permute.xlu0 2
        %936 = vperm.xlu0 %935, %v307
        %v937 = vpop.permute.xlu0 %936
        %939 = vset.pattern.permute.xlu0 2
        %940 = vperm.xlu0 %939, %v308
        %v941 = vpop.permute.xlu0 %940
        %943 = vset.pattern.permute.xlu0 2
        %944 = vperm.xlu0 %943, %v309
        %v945 = vpop.permute.xlu0 %944
        %947 = vset.pattern.permute.xlu0 2
        %948 = vperm.xlu0 %947, %v310
        %v949 = vpop.permute.xlu0 %948
        %951 = vset.pattern.permute.xlu0 2
        %952 = vperm.xlu0 %951, %v311
        %v953 = vpop.permute.xlu0 %952
        %955 = vset.pattern.permute.xlu0 2
        %956 = vperm.xlu0 %955, %v312
        %v957 = vpop.permute.xlu0 %956
        %v959 = vlaneseq
        %v960 = vshrl.u32 %v959, 7
        %v961 = vsub.s32 2, %v960
        %v962 = vrot.slane %v313, %v961
        %v963 = vlaneseq
        %v964 = vshrl.u32 %v963, 7
        %v965 = vsub.s32 6, %v964
        %v966 = vrot.slane %v313, %v965
        %v969 = vlaneseq
        %v970 = vshrl.u32 %v969, 7
        %v971 = vsub.s32 2, %v970
        %v972 = vrot.slane %v962, %v971
        %v973 = vlaneseq
        %v974 = vshrl.u32 %v973, 7
        %v975 = vsub.s32 2, %v974
        %v976 = vrot.slane %v966, %v975
        %v977 = vmul.f32 %v833, %v972
        %v978 = vmul.f32 %v833, %v976
        %v979 = vmul.f32 %v837, %v972
        %v980 = vmul.f32 %v837, %v976
        %v981 = vmul.f32 %v841, %v972
        %v982 = vmul.f32 %v841, %v976
        %v983 = vmul.f32 %v845, %v972
        %v984 = vmul.f32 %v845, %v976
        %v985 = vmul.f32 %v849, %v972
        %v986 = vmul.f32 %v849, %v976
        %v987 = vmul.f32 %v853, %v972
        %v988 = vmul.f32 %v853, %v976
        %v989 = vmul.f32 %v857, %v972
        %v990 = vmul.f32 %v857, %v976
        %v991 = vmul.f32 %v861, %v972
        %v992 = vmul.f32 %v861, %v976
        %v993 = vmul.f32 %v865, %v972
        %v994 = vmul.f32 %v865, %v976
        %v995 = vmul.f32 %v869, %v972
        %v996 = vmul.f32 %v869, %v976
        %v997 = vmul.f32 %v873, %v972
        %v998 = vmul.f32 %v873, %v976
        %v999 = vmul.f32 %v877, %v972
        %v1000 = vmul.f32 %v877, %v976
        %v1001 = vmul.f32 %v881, %v972
        %v1002 = vmul.f32 %v881, %v976
        %v1003 = vmul.f32 %v885, %v972
        %v1004 = vmul.f32 %v885, %v976
        %v1005 = vmul.f32 %v889, %v972
        %v1006 = vmul.f32 %v889, %v976
        %v1007 = vmul.f32 %v893, %v972
        %v1008 = vmul.f32 %v893, %v976
        %v1009 = vmul.f32 %v897, %v972
        %v1010 = vmul.f32 %v897, %v976
        %v1011 = vmul.f32 %v901, %v972
        %v1012 = vmul.f32 %v901, %v976
        %v1013 = vmul.f32 %v905, %v972
        %v1014 = vmul.f32 %v905, %v976
        %v1015 = vmul.f32 %v909, %v972
        %v1016 = vmul.f32 %v909, %v976
        %v1017 = vmul.f32 %v913, %v972
        %v1018 = vmul.f32 %v913, %v976
        %v1019 = vmul.f32 %v917, %v972
        %v1020 = vmul.f32 %v917, %v976
        %v1021 = vmul.f32 %v921, %v972
        %v1022 = vmul.f32 %v921, %v976
        %v1023 = vmul.f32 %v925, %v972
        %v1024 = vmul.f32 %v925, %v976
        %v1025 = vmul.f32 %v929, %v972
        %v1026 = vmul.f32 %v929, %v976
        %v1027 = vmul.f32 %v933, %v972
        %v1028 = vmul.f32 %v933, %v976
        %v1029 = vmul.f32 %v937, %v972
        %v1030 = vmul.f32 %v937, %v976
        %v1031 = vmul.f32 %v941, %v972
        %v1032 = vmul.f32 %v941, %v976
        %v1033 = vmul.f32 %v945, %v972
        %v1034 = vmul.f32 %v945, %v976
        %v1035 = vmul.f32 %v949, %v972
        %v1036 = vmul.f32 %v949, %v976
        %v1037 = vmul.f32 %v953, %v972
        %v1038 = vmul.f32 %v953, %v976
        %v1039 = vmul.f32 %v957, %v972
        %v1040 = vmul.f32 %v957, %v976
        %v1041 = vadd.f32 %v767, %v977
        %v1042 = vadd.f32 %v768, %v978
        %v1043 = vadd.f32 %v769, %v979
        %v1044 = vadd.f32 %v770, %v980
        %v1045 = vadd.f32 %v771, %v981
        %v1046 = vadd.f32 %v772, %v982
        %v1047 = vadd.f32 %v773, %v983
        %v1048 = vadd.f32 %v774, %v984
        %v1049 = vadd.f32 %v775, %v985
        %v1050 = vadd.f32 %v776, %v986
        %v1051 = vadd.f32 %v777, %v987
        %v1052 = vadd.f32 %v778, %v988
        %v1053 = vadd.f32 %v779, %v989
        %v1054 = vadd.f32 %v780, %v990
        %v1055 = vadd.f32 %v781, %v991
        %v1056 = vadd.f32 %v782, %v992
        %v1057 = vadd.f32 %v783, %v993
        %v1058 = vadd.f32 %v784, %v994
        %v1059 = vadd.f32 %v785, %v995
        %v1060 = vadd.f32 %v786, %v996
        %v1061 = vadd.f32 %v787, %v997
        %v1062 = vadd.f32 %v788, %v998
        %v1063 = vadd.f32 %v789, %v999
        %v1064 = vadd.f32 %v790, %v1000
        %v1065 = vadd.f32 %v791, %v1001
        %v1066 = vadd.f32 %v792, %v1002
        %v1067 = vadd.f32 %v793, %v1003
        %v1068 = vadd.f32 %v794, %v1004
        %v1069 = vadd.f32 %v795, %v1005
        %v1070 = vadd.f32 %v796, %v1006
        %v1071 = vadd.f32 %v797, %v1007
        %v1072 = vadd.f32 %v798, %v1008
        %v1073 = vadd.f32 %v799, %v1009
        %v1074 = vadd.f32 %v800, %v1010
        %v1075 = vadd.f32 %v801, %v1011
        %v1076 = vadd.f32 %v802, %v1012
        %v1077 = vadd.f32 %v803, %v1013
        %v1078 = vadd.f32 %v804, %v1014
        %v1079 = vadd.f32 %v805, %v1015
        %v1080 = vadd.f32 %v806, %v1016
        %v1081 = vadd.f32 %v807, %v1017
        %v1082 = vadd.f32 %v808, %v1018
        %v1083 = vadd.f32 %v809, %v1019
        %v1084 = vadd.f32 %v810, %v1020
        %v1085 = vadd.f32 %v811, %v1021
        %v1086 = vadd.f32 %v812, %v1022
        %v1087 = vadd.f32 %v813, %v1023
        %v1088 = vadd.f32 %v814, %v1024
        %v1089 = vadd.f32 %v815, %v1025
        %v1090 = vadd.f32 %v816, %v1026
        %v1091 = vadd.f32 %v817, %v1027
        %v1092 = vadd.f32 %v818, %v1028
        %v1093 = vadd.f32 %v819, %v1029
        %v1094 = vadd.f32 %v820, %v1030
        %v1095 = vadd.f32 %v821, %v1031
        %v1096 = vadd.f32 %v822, %v1032
        %v1097 = vadd.f32 %v823, %v1033
        %v1098 = vadd.f32 %v824, %v1034
        %v1099 = vadd.f32 %v825, %v1035
        %v1100 = vadd.f32 %v826, %v1036
        %v1101 = vadd.f32 %v827, %v1037
        %v1102 = vadd.f32 %v828, %v1038
        %v1103 = vadd.f32 %v829, %v1039
        %v1104 = vadd.f32 %v830, %v1040
        %v1105 = vld [vmem:[%s2] sm:$0x3]
        %v1107 = vlaneseq
        %v1108 = vshrl.u32 %v1107, 7
        %v1109 = vsub.s32 0, %v1108
        %v1110 = vrot.slane %v1105, %v1109
        %v1111 = vlaneseq
        %v1112 = vshrl.u32 %v1111, 7
        %v1113 = vsub.s32 1, %v1112
        %v1114 = vrot.slane %v1105, %v1113
        %v1117 = vadd.f32 %v1041, %v1110
        %v1118 = vadd.f32 %v1042, %v1114
        %v1119 = vadd.f32 %v1043, %v1110
        %v1120 = vadd.f32 %v1044, %v1114
        %v1121 = vadd.f32 %v1045, %v1110
        %v1122 = vadd.f32 %v1046, %v1114
        %v1123 = vadd.f32 %v1047, %v1110
        %v1124 = vadd.f32 %v1048, %v1114
        %v1125 = vadd.f32 %v1049, %v1110
        %v1126 = vadd.f32 %v1050, %v1114
        %v1127 = vadd.f32 %v1051, %v1110
        %v1128 = vadd.f32 %v1052, %v1114
        %v1129 = vadd.f32 %v1053, %v1110
        %v1130 = vadd.f32 %v1054, %v1114
        %v1131 = vadd.f32 %v1055, %v1110
        %v1132 = vadd.f32 %v1056, %v1114
        %v1133 = vadd.f32 %v1057, %v1110
        %v1134 = vadd.f32 %v1058, %v1114
        %v1135 = vadd.f32 %v1059, %v1110
        %v1136 = vadd.f32 %v1060, %v1114
        %v1137 = vadd.f32 %v1061, %v1110
        %v1138 = vadd.f32 %v1062, %v1114
        %v1139 = vadd.f32 %v1063, %v1110
        %v1140 = vadd.f32 %v1064, %v1114
        %v1141 = vadd.f32 %v1065, %v1110
        %v1142 = vadd.f32 %v1066, %v1114
        %v1143 = vadd.f32 %v1067, %v1110
        %v1144 = vadd.f32 %v1068, %v1114
        %v1145 = vadd.f32 %v1069, %v1110
        %v1146 = vadd.f32 %v1070, %v1114
        %v1147 = vadd.f32 %v1071, %v1110
        %v1148 = vadd.f32 %v1072, %v1114
        %v1149 = vadd.f32 %v1073, %v1110
        %v1150 = vadd.f32 %v1074, %v1114
        %v1151 = vadd.f32 %v1075, %v1110
        %v1152 = vadd.f32 %v1076, %v1114
        %v1153 = vadd.f32 %v1077, %v1110
        %v1154 = vadd.f32 %v1078, %v1114
        %v1155 = vadd.f32 %v1079, %v1110
        %v1156 = vadd.f32 %v1080, %v1114
        %v1157 = vadd.f32 %v1081, %v1110
        %v1158 = vadd.f32 %v1082, %v1114
        %v1159 = vadd.f32 %v1083, %v1110
        %v1160 = vadd.f32 %v1084, %v1114
        %v1161 = vadd.f32 %v1085, %v1110
        %v1162 = vadd.f32 %v1086, %v1114
        %v1163 = vadd.f32 %v1087, %v1110
        %v1164 = vadd.f32 %v1088, %v1114
        %v1165 = vadd.f32 %v1089, %v1110
        %v1166 = vadd.f32 %v1090, %v1114
        %v1167 = vadd.f32 %v1091, %v1110
        %v1168 = vadd.f32 %v1092, %v1114
        %v1169 = vadd.f32 %v1093, %v1110
        %v1170 = vadd.f32 %v1094, %v1114
        %v1171 = vadd.f32 %v1095, %v1110
        %v1172 = vadd.f32 %v1096, %v1114
        %v1173 = vadd.f32 %v1097, %v1110
        %v1174 = vadd.f32 %v1098, %v1114
        %v1175 = vadd.f32 %v1099, %v1110
        %v1176 = vadd.f32 %v1100, %v1114
        %v1177 = vadd.f32 %v1101, %v1110
        %v1178 = vadd.f32 %v1102, %v1114
        %v1179 = vadd.f32 %v1103, %v1110
        %v1180 = vadd.f32 %v1104, %v1114
        %v1181 = vmax.f32 %v1117, 0.0
        %v1182 = vmax.f32 %v1118, 0.0
        %v1183 = vmax.f32 %v1119, 0.0
        %v1184 = vmax.f32 %v1120, 0.0
        %v1185 = vmax.f32 %v1121, 0.0
        %v1186 = vmax.f32 %v1122, 0.0
        %v1187 = vmax.f32 %v1123, 0.0
        %v1188 = vmax.f32 %v1124, 0.0
        %v1189 = vmax.f32 %v1125, 0.0
        %v1190 = vmax.f32 %v1126, 0.0
        %v1191 = vmax.f32 %v1127, 0.0
        %v1192 = vmax.f32 %v1128, 0.0
        %v1193 = vmax.f32 %v1129, 0.0
        %v1194 = vmax.f32 %v1130, 0.0
        %v1195 = vmax.f32 %v1131, 0.0
        %v1196 = vmax.f32 %v1132, 0.0
        %v1197 = vmax.f32 %v1133, 0.0
        %v1198 = vmax.f32 %v1134, 0.0
        %v1199 = vmax.f32 %v1135, 0.0
        %v1200 = vmax.f32 %v1136, 0.0
        %v1201 = vmax.f32 %v1137, 0.0
        %v1202 = vmax.f32 %v1138, 0.0
        %v1203 = vmax.f32 %v1139, 0.0
        %v1204 = vmax.f32 %v1140, 0.0
        %v1205 = vmax.f32 %v1141, 0.0
        %v1206 = vmax.f32 %v1142, 0.0
        %v1207 = vmax.f32 %v1143, 0.0
        %v1208 = vmax.f32 %v1144, 0.0
        %v1209 = vmax.f32 %v1145, 0.0
        %v1210 = vmax.f32 %v1146, 0.0
        %v1211 = vmax.f32 %v1147, 0.0
        %v1212 = vmax.f32 %v1148, 0.0
        %v1213 = vmax.f32 %v1149, 0.0
        %v1214 = vmax.f32 %v1150, 0.0
        %v1215 = vmax.f32 %v1151, 0.0
        %v1216 = vmax.f32 %v1152, 0.0
        %v1217 = vmax.f32 %v1153, 0.0
        %v1218 = vmax.f32 %v1154, 0.0
        %v1219 = vmax.f32 %v1155, 0.0
        %v1220 = vmax.f32 %v1156, 0.0
        %v1221 = vmax.f32 %v1157, 0.0
        %v1222 = vmax.f32 %v1158, 0.0
        %v1223 = vmax.f32 %v1159, 0.0
        %v1224 = vmax.f32 %v1160, 0.0
        %v1225 = vmax.f32 %v1161, 0.0
        %v1226 = vmax.f32 %v1162, 0.0
        %v1227 = vmax.f32 %v1163, 0.0
        %v1228 = vmax.f32 %v1164, 0.0
        %v1229 = vmax.f32 %v1165, 0.0
        %v1230 = vmax.f32 %v1166, 0.0
        %v1231 = vmax.f32 %v1167, 0.0
        %v1232 = vmax.f32 %v1168, 0.0
        %v1233 = vmax.f32 %v1169, 0.0
        %v1234 = vmax.f32 %v1170, 0.0
        %v1235 = vmax.f32 %v1171, 0.0
        %v1236 = vmax.f32 %v1172, 0.0
        %v1237 = vmax.f32 %v1173, 0.0
        %v1238 = vmax.f32 %v1174, 0.0
        %v1239 = vmax.f32 %v1175, 0.0
        %v1240 = vmax.f32 %v1176, 0.0
        %v1241 = vmax.f32 %v1177, 0.0
        %v1242 = vmax.f32 %v1178, 0.0
        %v1243 = vmax.f32 %v1179, 0.0
        %v1244 = vmax.f32 %v1180, 0.0
        %v1245 = vpack.c.bf16 %v1183, %v1181
        %v1246 = vpack.c.bf16 %v1184, %v1182
        %v1247 = vpack.c.bf16 %v1187, %v1185
        %v1248 = vpack.c.bf16 %v1188, %v1186
        %v1249 = vpack.c.bf16 %v1191, %v1189
        %v1250 = vpack.c.bf16 %v1192, %v1190
        %v1251 = vpack.c.bf16 %v1195, %v1193
        %v1252 = vpack.c.bf16 %v1196, %v1194
        %v1253 = vpack.c.bf16 %v1199, %v1197
        %v1254 = vpack.c.bf16 %v1200, %v1198
        %v1255 = vpack.c.bf16 %v1203, %v1201
        %v1256 = vpack.c.bf16 %v1204, %v1202
        %v1257 = vpack.c.bf16 %v1207, %v1205
        %v1258 = vpack.c.bf16 %v1208, %v1206
        %v1259 = vpack.c.bf16 %v1211, %v1209
        %v1260 = vpack.c.bf16 %v1212, %v1210
        %v1261 = vpack.c.bf16 %v1215, %v1213
        %v1262 = vpack.c.bf16 %v1216, %v1214
        %v1263 = vpack.c.bf16 %v1219, %v1217
        %v1264 = vpack.c.bf16 %v1220, %v1218
        %v1265 = vpack.c.bf16 %v1223, %v1221
        %v1266 = vpack.c.bf16 %v1224, %v1222
        %v1267 = vpack.c.bf16 %v1227, %v1225
        %v1268 = vpack.c.bf16 %v1228, %v1226
        %v1269 = vpack.c.bf16 %v1231, %v1229
        %v1270 = vpack.c.bf16 %v1232, %v1230
        %v1271 = vpack.c.bf16 %v1235, %v1233
        %v1272 = vpack.c.bf16 %v1236, %v1234
        %v1273 = vpack.c.bf16 %v1239, %v1237
        %v1274 = vpack.c.bf16 %v1240, %v1238
        %v1275 = vpack.c.bf16 %v1243, %v1241
        %v1276 = vpack.c.bf16 %v1244, %v1242
        %v1277 = vld [vmem:[%s3] sm:$0xf]
        %v1278 = vld [vmem:[%s3 + $0x8] sm:$0xf]
        %v1279 = vld [vmem:[%s3 + $0x10] sm:$0xf]
        %v1280 = vld [vmem:[%s3 + $0x18] sm:$0xf]
        %v1281 = vld [vmem:[%s3 + $0x20] sm:$0xf]
        %v1282 = vld [vmem:[%s3 + $0x28] sm:$0xf]
        %v1283 = vld [vmem:[%s3 + $0x30] sm:$0xf]
        %v1284 = vld [vmem:[%s3 + $0x38] sm:$0xf]
        %v1285 = vld [vmem:[%s3 + $0x40] sm:$0xf]
        %v1286 = vld [vmem:[%s3 + $0x48] sm:$0xf]
        %v1287 = vld [vmem:[%s3 + $0x50] sm:$0xf]
        %v1288 = vld [vmem:[%s3 + $0x58] sm:$0xf]
        %v1289 = vld [vmem:[%s3 + $0x60] sm:$0xf]
        %v1290 = vld [vmem:[%s3 + $0x68] sm:$0xf]
        %v1291 = vld [vmem:[%s3 + $0x70] sm:$0xf]
        %v1292 = vld [vmem:[%s3 + $0x78] sm:$0xf]
        %v1293 = vld [vmem:[%s3 + $0x80] sm:$0xf]
        %v1294 = vld [vmem:[%s3 + $0x88] sm:$0xf]
        %v1295 = vld [vmem:[%s3 + $0x90] sm:$0xf]
        %v1296 = vld [vmem:[%s3 + $0x98] sm:$0xf]
        %v1297 = vld [vmem:[%s3 + $0xa0] sm:$0xf]
        %v1298 = vld [vmem:[%s3 + $0xa8] sm:$0xf]
        %v1299 = vld [vmem:[%s3 + $0xb0] sm:$0xf]
        %v1300 = vld [vmem:[%s3 + $0xb8] sm:$0xf]
        %v1301 = vld [vmem:[%s3 + $0xc0] sm:$0xf]
        %v1302 = vld [vmem:[%s3 + $0xc8] sm:$0xf]
        %v1303 = vld [vmem:[%s3 + $0xd0] sm:$0xf]
        %v1304 = vld [vmem:[%s3 + $0xd8] sm:$0xf]
        %v1305 = vld [vmem:[%s3 + $0xe0] sm:$0xf]
        %v1306 = vld [vmem:[%s3 + $0xe8] sm:$0xf]
        %v1307 = vld [vmem:[%s3 + $0xf0] sm:$0xf]
        %v1308 = vld [vmem:[%s3 + $0xf8] sm:$0xf]
        %v1309 = vld [vmem:[%s4] sm:$0x1]
        %v1311 = vlaneseq
        %v1312 = vshrl.u32 %v1311, 7
        %v1313 = vsub.s32 0, %v1312
        %v1314 = vrot.slane %v1309, %v1313
        %v1348 = vunpack.c.l.b16 %v1277
        %v1349 = vunpack.c.l.b16 %v1278
        %v1350 = vunpack.c.l.b16 %v1279
        %v1351 = vunpack.c.l.b16 %v1280
        %v1352 = vunpack.c.l.b16 %v1281
        %v1353 = vunpack.c.l.b16 %v1282
        %v1354 = vunpack.c.l.b16 %v1283
        %v1355 = vunpack.c.l.b16 %v1284
        %v1356 = vunpack.c.l.b16 %v1285
        %v1357 = vunpack.c.l.b16 %v1286
        %v1358 = vunpack.c.l.b16 %v1287
        %v1359 = vunpack.c.l.b16 %v1288
        %v1360 = vunpack.c.l.b16 %v1289
        %v1361 = vunpack.c.l.b16 %v1290
        %v1362 = vunpack.c.l.b16 %v1291
        %v1363 = vunpack.c.l.b16 %v1292
        %v1364 = vunpack.c.l.b16 %v1293
        %v1365 = vunpack.c.l.b16 %v1294
        %v1366 = vunpack.c.l.b16 %v1295
        %v1367 = vunpack.c.l.b16 %v1296
        %v1368 = vunpack.c.l.b16 %v1297
        %v1369 = vunpack.c.l.b16 %v1298
        %v1370 = vunpack.c.l.b16 %v1299
        %v1371 = vunpack.c.l.b16 %v1300
        %v1372 = vunpack.c.l.b16 %v1301
        %v1373 = vunpack.c.l.b16 %v1302
        %v1374 = vunpack.c.l.b16 %v1303
        %v1375 = vunpack.c.l.b16 %v1304
        %v1376 = vunpack.c.l.b16 %v1305
        %v1377 = vunpack.c.l.b16 %v1306
        %v1378 = vunpack.c.l.b16 %v1307
        %v1379 = vunpack.c.l.b16 %v1308
        %v1380 = vpack.c.b16 %v1349, %v1348
        %v1381 = vpack.c.b16 %v1351, %v1350
        %v1382 = vpack.c.b16 %v1353, %v1352
        %v1383 = vpack.c.b16 %v1355, %v1354
        %v1384 = vpack.c.b16 %v1357, %v1356
        %v1385 = vpack.c.b16 %v1359, %v1358
        %v1386 = vpack.c.b16 %v1361, %v1360
        %v1387 = vpack.c.b16 %v1363, %v1362
        %v1388 = vpack.c.b16 %v1365, %v1364
        %v1389 = vpack.c.b16 %v1367, %v1366
        %v1390 = vpack.c.b16 %v1369, %v1368
        %v1391 = vpack.c.b16 %v1371, %v1370
        %v1392 = vpack.c.b16 %v1373, %v1372
        %v1393 = vpack.c.b16 %v1375, %v1374
        %v1394 = vpack.c.b16 %v1377, %v1376
        %v1395 = vpack.c.b16 %v1379, %v1378
        %1412 = vmatprep.subr.bf16.mxu0 0
        %1413 = vmatpush1.bf16.msra.mxu0 %v1387
        %1414 = vmatprep.subr.bf16.mxu0 0
        %1415 = vmatpush1.bf16.msra.mxu0 %v1386
        %1416 = vmatprep.subr.bf16.mxu0 0
        %1417 = vmatpush1.bf16.msra.mxu0 %v1385
        %1418 = vmatprep.subr.bf16.mxu0 0
        %1419 = vmatpush1.bf16.msra.mxu0 %v1384
        %1420 = vmatprep.subr.bf16.mxu0 0
        %1421 = vmatpush1.bf16.msra.mxu0 %v1383
        %1422 = vmatprep.subr.bf16.mxu0 0
        %1423 = vmatpush1.bf16.msra.mxu0 %v1382
        %1424 = vmatprep.subr.bf16.mxu0 0
        %1425 = vmatpush1.bf16.msra.mxu0 %v1381
        %1426 = vmatprep.subr.bf16.mxu0 0
        %1427 = vmatpush1.bf16.msra.mxu0 %v1380
        %1428 = vmatprep.subr.bf16.mxu0 0
        %1429 = vmatpush2.bf16.msra.mxu0 %v1395
        %1430 = vmatprep.subr.bf16.mxu0 0
        %1431 = vmatpush2.bf16.msra.mxu0 %v1394
        %1432 = vmatprep.subr.bf16.mxu0 0
        %1433 = vmatpush2.bf16.msra.mxu0 %v1393
        %1434 = vmatprep.subr.bf16.mxu0 0
        %1435 = vmatpush2.bf16.msra.mxu0 %v1392
        %1436 = vmatprep.subr.bf16.mxu0 0
        %1437 = vmatpush2.bf16.msra.mxu0 %v1391
        %1438 = vmatprep.subr.bf16.mxu0 0
        %1439 = vmatpush2.bf16.msra.mxu0 %v1390
        %1440 = vmatprep.subr.bf16.mxu0 0
        %1441 = vmatpush2.bf16.msra.mxu0 %v1389
        %1442 = vmatprep.subr.bf16.mxu0 0
        %1443 = vmatpush2.bf16.msra.mxu0 %v1388
        %1444 = vmatprep.mubr.bf16.mxu0 %v1246
        %1445 = vmatmul.mubr.bf16.gmra.mxu0 %v1245
        %v1446 = vpop.f32.mrf.mxu0
        %v1447 = vadd.f32 %v1314, %v1446
        %v1448 = vpop.f32.mrf.mxu0
        %v1449 = vpop.f32.mrf.mxu0
        %v1450 = vadd.f32 %v1314, %v1449
        %v1451 = vpop.f32.mrf.mxu0
        %1452 = vmatprep.mubr.bf16.mxu0 %v1248
        %1453 = vmatmul.mubr.bf16.gmra.mxu0 %v1247
        %v1454 = vpop.f32.mrf.mxu0
        %v1455 = vadd.f32 %v1314, %v1454
        %v1456 = vpop.f32.mrf.mxu0
        %v1457 = vpop.f32.mrf.mxu0
        %v1458 = vadd.f32 %v1314, %v1457
        %v1459 = vpop.f32.mrf.mxu0
        %1460 = vmatprep.mubr.bf16.mxu0 %v1250
        %1461 = vmatmul.mubr.bf16.gmra.mxu0 %v1249
        %v1462 = vpop.f32.mrf.mxu0
        %v1463 = vadd.f32 %v1314, %v1462
        %v1464 = vpop.f32.mrf.mxu0
        %v1465 = vpop.f32.mrf.mxu0
        %v1466 = vadd.f32 %v1314, %v1465
        %v1467 = vpop.f32.mrf.mxu0
        %1468 = vmatprep.mubr.bf16.mxu0 %v1252
        %1469 = vmatmul.mubr.bf16.gmra.mxu0 %v1251
        %v1470 = vpop.f32.mrf.mxu0
        %v1471 = vadd.f32 %v1314, %v1470
        %v1472 = vpop.f32.mrf.mxu0
        %v1473 = vpop.f32.mrf.mxu0
        %v1474 = vadd.f32 %v1314, %v1473
        %v1475 = vpop.f32.mrf.mxu0
        %1476 = vmatprep.mubr.bf16.mxu0 %v1254
        %1477 = vmatmul.mubr.bf16.gmra.mxu0 %v1253
        %v1478 = vpop.f32.mrf.mxu0
        %v1479 = vadd.f32 %v1314, %v1478
        %v1480 = vpop.f32.mrf.mxu0
        %v1481 = vpop.f32.mrf.mxu0
        %v1482 = vadd.f32 %v1314, %v1481
        %v1483 = vpop.f32.mrf.mxu0
        %1484 = vmatprep.mubr.bf16.mxu0 %v1256
        %1485 = vmatmul.mubr.bf16.gmra.mxu0 %v1255
        %v1486 = vpop.f32.mrf.mxu0
        %v1487 = vadd.f32 %v1314, %v1486
        %v1488 = vpop.f32.mrf.mxu0
        %v1489 = vpop.f32.mrf.mxu0
        %v1490 = vadd.f32 %v1314, %v1489
        %v1491 = vpop.f32.mrf.mxu0
        %1492 = vmatprep.mubr.bf16.mxu0 %v1258
        %1493 = vmatmul.mubr.bf16.gmra.mxu0 %v1257
        %v1494 = vpop.f32.mrf.mxu0
        %v1495 = vadd.f32 %v1314, %v1494
        %v1496 = vpop.f32.mrf.mxu0
        %v1497 = vpop.f32.mrf.mxu0
        %v1498 = vadd.f32 %v1314, %v1497
        %v1499 = vpop.f32.mrf.mxu0
        %1500 = vmatprep.mubr.bf16.mxu0 %v1260
        %1501 = vmatmul.mubr.bf16.gmra.mxu0 %v1259
        %v1502 = vpop.f32.mrf.mxu0
        %v1503 = vadd.f32 %v1314, %v1502
        %v1504 = vpop.f32.mrf.mxu0
        %v1505 = vpop.f32.mrf.mxu0
        %v1506 = vadd.f32 %v1314, %v1505
        %v1507 = vpop.f32.mrf.mxu0
        %1508 = vmatprep.mubr.bf16.mxu0 %v1262
        %1509 = vmatmul.mubr.bf16.gmra.mxu0 %v1261
        %v1510 = vpop.f32.mrf.mxu0
        %v1511 = vadd.f32 %v1314, %v1510
        %v1512 = vpop.f32.mrf.mxu0
        %v1513 = vpop.f32.mrf.mxu0
        %v1514 = vadd.f32 %v1314, %v1513
        %v1515 = vpop.f32.mrf.mxu0
        %1516 = vmatprep.mubr.bf16.mxu0 %v1264
        %1517 = vmatmul.mubr.bf16.gmra.mxu0 %v1263
        %v1518 = vpop.f32.mrf.mxu0
        %v1519 = vadd.f32 %v1314, %v1518
        %v1520 = vpop.f32.mrf.mxu0
        %v1521 = vpop.f32.mrf.mxu0
        %v1522 = vadd.f32 %v1314, %v1521
        %v1523 = vpop.f32.mrf.mxu0
        %1524 = vmatprep.mubr.bf16.mxu0 %v1266
        %1525 = vmatmul.mubr.bf16.gmra.mxu0 %v1265
        %v1526 = vpop.f32.mrf.mxu0
        %v1527 = vadd.f32 %v1314, %v1526
        %v1528 = vpop.f32.mrf.mxu0
        %v1529 = vpop.f32.mrf.mxu0
        %v1530 = vadd.f32 %v1314, %v1529
        %v1531 = vpop.f32.mrf.mxu0
        %1532 = vmatprep.mubr.bf16.mxu0 %v1268
        %1533 = vmatmul.mubr.bf16.gmra.mxu0 %v1267
        %v1534 = vpop.f32.mrf.mxu0
        %v1535 = vadd.f32 %v1314, %v1534
        %v1536 = vpop.f32.mrf.mxu0
        %v1537 = vpop.f32.mrf.mxu0
        %v1538 = vadd.f32 %v1314, %v1537
        %v1539 = vpop.f32.mrf.mxu0
        %1540 = vmatprep.mubr.bf16.mxu0 %v1270
        %1541 = vmatmul.mubr.bf16.gmra.mxu0 %v1269
        %v1542 = vpop.f32.mrf.mxu0
        %v1543 = vadd.f32 %v1314, %v1542
        %v1544 = vpop.f32.mrf.mxu0
        %v1545 = vpop.f32.mrf.mxu0
        %v1546 = vadd.f32 %v1314, %v1545
        %v1547 = vpop.f32.mrf.mxu0
        %1548 = vmatprep.mubr.bf16.mxu0 %v1272
        %1549 = vmatmul.mubr.bf16.gmra.mxu0 %v1271
        %v1550 = vpop.f32.mrf.mxu0
        %v1551 = vadd.f32 %v1314, %v1550
        %v1552 = vpop.f32.mrf.mxu0
        %v1553 = vpop.f32.mrf.mxu0
        %v1554 = vadd.f32 %v1314, %v1553
        %v1555 = vpop.f32.mrf.mxu0
        %1556 = vmatprep.mubr.bf16.mxu0 %v1274
        %1557 = vmatmul.mubr.bf16.gmra.mxu0 %v1273
        %v1558 = vpop.f32.mrf.mxu0
        %v1559 = vadd.f32 %v1314, %v1558
        %v1560 = vpop.f32.mrf.mxu0
        %v1561 = vpop.f32.mrf.mxu0
        %v1562 = vadd.f32 %v1314, %v1561
        %v1563 = vpop.f32.mrf.mxu0
        %1564 = vmatprep.mubr.bf16.mxu0 %v1276
        %1565 = vmatmul.mubr.bf16.gmra.mxu0 %v1275
        %v1566 = vpop.f32.mrf.mxu0
        %v1567 = vadd.f32 %v1314, %v1566
        %v1568 = vpop.f32.mrf.mxu0
        %v1569 = vpop.f32.mrf.mxu0
        %v1570 = vadd.f32 %v1314, %v1569
        %v1571 = vpop.f32.mrf.mxu0
        %1572 = vdwg.mxu0
        %v1573 = vmax.f32 %v1447, 0.0
        %v1574 = vmax.f32 %v1450, 0.0
        %v1575 = vmax.f32 %v1455, 0.0
        %v1576 = vmax.f32 %v1458, 0.0
        %v1577 = vmax.f32 %v1463, 0.0
        %v1578 = vmax.f32 %v1466, 0.0
        %v1579 = vmax.f32 %v1471, 0.0
        %v1580 = vmax.f32 %v1474, 0.0
        %v1581 = vmax.f32 %v1479, 0.0
        %v1582 = vmax.f32 %v1482, 0.0
        %v1583 = vmax.f32 %v1487, 0.0
        %v1584 = vmax.f32 %v1490, 0.0
        %v1585 = vmax.f32 %v1495, 0.0
        %v1586 = vmax.f32 %v1498, 0.0
        %v1587 = vmax.f32 %v1503, 0.0
        %v1588 = vmax.f32 %v1506, 0.0
        %v1589 = vmax.f32 %v1511, 0.0
        %v1590 = vmax.f32 %v1514, 0.0
        %v1591 = vmax.f32 %v1519, 0.0
        %v1592 = vmax.f32 %v1522, 0.0
        %v1593 = vmax.f32 %v1527, 0.0
        %v1594 = vmax.f32 %v1530, 0.0
        %v1595 = vmax.f32 %v1535, 0.0
        %v1596 = vmax.f32 %v1538, 0.0
        %v1597 = vmax.f32 %v1543, 0.0
        %v1598 = vmax.f32 %v1546, 0.0
        %v1599 = vmax.f32 %v1551, 0.0
        %v1600 = vmax.f32 %v1554, 0.0
        %v1601 = vmax.f32 %v1559, 0.0
        %v1602 = vmax.f32 %v1562, 0.0
        %v1603 = vmax.f32 %v1567, 0.0
        %v1604 = vmax.f32 %v1570, 0.0
        %v1605 = vpack.c.bf16 %v1574, %v1573
        %v1606 = vpack.c.bf16 %v1576, %v1575
        %v1607 = vpack.c.bf16 %v1578, %v1577
        %v1608 = vpack.c.bf16 %v1580, %v1579
        %v1609 = vpack.c.bf16 %v1582, %v1581
        %v1610 = vpack.c.bf16 %v1584, %v1583
        %v1611 = vpack.c.bf16 %v1586, %v1585
        %v1612 = vpack.c.bf16 %v1588, %v1587
        %v1613 = vpack.c.bf16 %v1590, %v1589
        %v1614 = vpack.c.bf16 %v1592, %v1591
        %v1615 = vpack.c.bf16 %v1594, %v1593
        %v1616 = vpack.c.bf16 %v1596, %v1595
        %v1617 = vpack.c.bf16 %v1598, %v1597
        %v1618 = vpack.c.bf16 %v1600, %v1599
        %v1619 = vpack.c.bf16 %v1602, %v1601
        %v1620 = vpack.c.bf16 %v1604, %v1603
        %v1621 = vld [vmem:[%s5] sm:$0xf]
        %v1622 = vld [vmem:[%s5 + $0x4] sm:$0xf]
        %v1623 = vld [vmem:[%s5 + $0x8] sm:$0xf]
        %v1624 = vld [vmem:[%s5 + $0xc] sm:$0xf]
        %v1625 = vld [vmem:[%s5 + $0x10] sm:$0xf]
        %v1626 = vld [vmem:[%s5 + $0x14] sm:$0xf]
        %v1627 = vld [vmem:[%s5 + $0x18] sm:$0xf]
        %v1628 = vld [vmem:[%s5 + $0x1c] sm:$0xf]
        %v1629 = vld [vmem:[%s5 + $0x20] sm:$0xf]
        %v1630 = vld [vmem:[%s5 + $0x24] sm:$0xf]
        %v1631 = vld [vmem:[%s5 + $0x28] sm:$0xf]
        %v1632 = vld [vmem:[%s5 + $0x2c] sm:$0xf]
        %v1633 = vld [vmem:[%s5 + $0x30] sm:$0xf]
        %v1634 = vld [vmem:[%s5 + $0x34] sm:$0xf]
        %v1635 = vld [vmem:[%s5 + $0x38] sm:$0xf]
        %v1636 = vld [vmem:[%s5 + $0x3c] sm:$0xf]
        %v1637 = vld [vmem:[%s3 + $0x4] sm:$0xf]
        %v1638 = vld [vmem:[%s3 + $0xc] sm:$0xf]
        %v1639 = vld [vmem:[%s3 + $0x14] sm:$0xf]
        %v1640 = vld [vmem:[%s3 + $0x1c] sm:$0xf]
        %v1641 = vld [vmem:[%s3 + $0x24] sm:$0xf]
        %v1642 = vld [vmem:[%s3 + $0x2c] sm:$0xf]
        %v1643 = vld [vmem:[%s3 + $0x34] sm:$0xf]
        %v1644 = vld [vmem:[%s3 + $0x3c] sm:$0xf]
        %v1645 = vld [vmem:[%s3 + $0x44] sm:$0xf]
        %v1646 = vld [vmem:[%s3 + $0x4c] sm:$0xf]
        %v1647 = vld [vmem:[%s3 + $0x54] sm:$0xf]
        %v1648 = vld [vmem:[%s3 + $0x5c] sm:$0xf]
        %v1649 = vld [vmem:[%s3 + $0x64] sm:$0xf]
        %v1650 = vld [vmem:[%s3 + $0x6c] sm:$0xf]
        %v1651 = vld [vmem:[%s3 + $0x74] sm:$0xf]
        %v1652 = vld [vmem:[%s3 + $0x7c] sm:$0xf]
        %v1653 = vld [vmem:[%s3 + $0x84] sm:$0xf]
        %v1654 = vld [vmem:[%s3 + $0x8c] sm:$0xf]
        %v1655 = vld [vmem:[%s3 + $0x94] sm:$0xf]
        %v1656 = vld [vmem:[%s3 + $0x9c] sm:$0xf]
        %v1657 = vld [vmem:[%s3 + $0xa4] sm:$0xf]
        %v1658 = vld [vmem:[%s3 + $0xac] sm:$0xf]
        %v1659 = vld [vmem:[%s3 + $0xb4] sm:$0xf]
        %v1660 = vld [vmem:[%s3 + $0xbc] sm:$0xf]
        %v1661 = vld [vmem:[%s3 + $0xc4] sm:$0xf]
        %v1662 = vld [vmem:[%s3 + $0xcc] sm:$0xf]
        %v1663 = vld [vmem:[%s3 + $0xd4] sm:$0xf]
        %v1664 = vld [vmem:[%s3 + $0xdc] sm:$0xf]
        %v1665 = vld [vmem:[%s3 + $0xe4] sm:$0xf]
        %v1666 = vld [vmem:[%s3 + $0xec] sm:$0xf]
        %v1667 = vld [vmem:[%s3 + $0xf4] sm:$0xf]
        %v1668 = vld [vmem:[%s3 + $0xfc] sm:$0xf]
        %v1669 = vld [vmem:[%s4 + $0x1] sm:$0x1]
        %v1671 = vlaneseq
        %v1672 = vshrl.u32 %v1671, 7
        %v1673 = vsub.s32 0, %v1672
        %v1674 = vrot.slane %v1669, %v1673
        %v1708 = vunpack.c.l.b16 %v1637
        %v1709 = vunpack.c.l.b16 %v1638
        %v1710 = vunpack.c.l.b16 %v1639
        %v1711 = vunpack.c.l.b16 %v1640
        %v1712 = vunpack.c.l.b16 %v1641
        %v1713 = vunpack.c.l.b16 %v1642
        %v1714 = vunpack.c.l.b16 %v1643
        %v1715 = vunpack.c.l.b16 %v1644
        %v1716 = vunpack.c.l.b16 %v1645
        %v1717 = vunpack.c.l.b16 %v1646
        %v1718 = vunpack.c.l.b16 %v1647
        %v1719 = vunpack.c.l.b16 %v1648
        %v1720 = vunpack.c.l.b16 %v1649
        %v1721 = vunpack.c.l.b16 %v1650
        %v1722 = vunpack.c.l.b16 %v1651
        %v1723 = vunpack.c.l.b16 %v1652
        %v1724 = vunpack.c.l.b16 %v1653
        %v1725 = vunpack.c.l.b16 %v1654
        %v1726 = vunpack.c.l.b16 %v1655
        %v1727 = vunpack.c.l.b16 %v1656
        %v1728 = vunpack.c.l.b16 %v1657
        %v1729 = vunpack.c.l.b16 %v1658
        %v1730 = vunpack.c.l.b16 %v1659
        %v1731 = vunpack.c.l.b16 %v1660
        %v1732 = vunpack.c.l.b16 %v1661
        %v1733 = vunpack.c.l.b16 %v1662
        %v1734 = vunpack.c.l.b16 %v1663
        %v1735 = vunpack.c.l.b16 %v1664
        %v1736 = vunpack.c.l.b16 %v1665
        %v1737 = vunpack.c.l.b16 %v1666
        %v1738 = vunpack.c.l.b16 %v1667
        %v1739 = vunpack.c.l.b16 %v1668
        %v1740 = vpack.c.b16 %v1709, %v1708
        %v1741 = vpack.c.b16 %v1711, %v1710
        %v1742 = vpack.c.b16 %v1713, %v1712
        %v1743 = vpack.c.b16 %v1715, %v1714
        %v1744 = vpack.c.b16 %v1717, %v1716
        %v1745 = vpack.c.b16 %v1719, %v1718
        %v1746 = vpack.c.b16 %v1721, %v1720
        %v1747 = vpack.c.b16 %v1723, %v1722
        %v1748 = vpack.c.b16 %v1725, %v1724
        %v1749 = vpack.c.b16 %v1727, %v1726
        %v1750 = vpack.c.b16 %v1729, %v1728
        %v1751 = vpack.c.b16 %v1731, %v1730
        %v1752 = vpack.c.b16 %v1733, %v1732
        %v1753 = vpack.c.b16 %v1735, %v1734
        %v1754 = vpack.c.b16 %v1737, %v1736
        %v1755 = vpack.c.b16 %v1739, %v1738
        %1772 = vmatprep.subr.bf16.mxu0 0
        %1773 = vmatpush1.bf16.msra.mxu0 %v1747
        %1774 = vmatprep.subr.bf16.mxu0 0
        %1775 = vmatpush1.bf16.msra.mxu0 %v1746
        %1776 = vmatprep.subr.bf16.mxu0 0
        %1777 = vmatpush1.bf16.msra.mxu0 %v1745
        %1778 = vmatprep.subr.bf16.mxu0 0
        %1779 = vmatpush1.bf16.msra.mxu0 %v1744
        %1780 = vmatprep.subr.bf16.mxu0 0
        %1781 = vmatpush1.bf16.msra.mxu0 %v1743
        %1782 = vmatprep.subr.bf16.mxu0 0
        %1783 = vmatpush1.bf16.msra.mxu0 %v1742
        %1784 = vmatprep.subr.bf16.mxu0 0
        %1785 = vmatpush1.bf16.msra.mxu0 %v1741
        %1786 = vmatprep.subr.bf16.mxu0 0
        %1787 = vmatpush1.bf16.msra.mxu0 %v1740
        %1788 = vmatprep.subr.bf16.mxu0 0
        %1789 = vmatpush2.bf16.msra.mxu0 %v1755
        %1790 = vmatprep.subr.bf16.mxu0 0
        %1791 = vmatpush2.bf16.msra.mxu0 %v1754
        %1792 = vmatprep.subr.bf16.mxu0 0
        %1793 = vmatpush2.bf16.msra.mxu0 %v1753
        %1794 = vmatprep.subr.bf16.mxu0 0
        %1795 = vmatpush2.bf16.msra.mxu0 %v1752
        %1796 = vmatprep.subr.bf16.mxu0 0
        %1797 = vmatpush2.bf16.msra.mxu0 %v1751
        %1798 = vmatprep.subr.bf16.mxu0 0
        %1799 = vmatpush2.bf16.msra.mxu0 %v1750
        %1800 = vmatprep.subr.bf16.mxu0 0
        %1801 = vmatpush2.bf16.msra.mxu0 %v1749
        %1802 = vmatprep.subr.bf16.mxu0 0
        %1803 = vmatpush2.bf16.msra.mxu0 %v1748
        %1804 = vmatprep.mubr.bf16.mxu0 %v1246
        %1805 = vmatmul.mubr.bf16.gmra.mxu0 %v1245
        %v1806 = vpop.f32.mrf.mxu0
        %v1807 = vadd.f32 %v1674, %v1806
        %v1808 = vpop.f32.mrf.mxu0
        %v1809 = vpop.f32.mrf.mxu0
        %v1810 = vadd.f32 %v1674, %v1809
        %v1811 = vpop.f32.mrf.mxu0
        %1812 = vmatprep.mubr.bf16.mxu0 %v1248
        %1813 = vmatmul.mubr.bf16.gmra.mxu0 %v1247
        %v1814 = vpop.f32.mrf.mxu0
        %v1815 = vadd.f32 %v1674, %v1814
        %v1816 = vpop.f32.mrf.mxu0
        %v1817 = vpop.f32.mrf.mxu0
        %v1818 = vadd.f32 %v1674, %v1817
        %v1819 = vpop.f32.mrf.mxu0
        %1820 = vmatprep.mubr.bf16.mxu0 %v1250
        %1821 = vmatmul.mubr.bf16.gmra.mxu0 %v1249
        %v1822 = vpop.f32.mrf.mxu0
        %v1823 = vadd.f32 %v1674, %v1822
        %v1824 = vpop.f32.mrf.mxu0
        %v1825 = vpop.f32.mrf.mxu0
        %v1826 = vadd.f32 %v1674, %v1825
        %v1827 = vpop.f32.mrf.mxu0
        %1828 = vmatprep.mubr.bf16.mxu0 %v1252
        %1829 = vmatmul.mubr.bf16.gmra.mxu0 %v1251
        %v1830 = vpop.f32.mrf.mxu0
        %v1831 = vadd.f32 %v1674, %v1830
        %v1832 = vpop.f32.mrf.mxu0
        %v1833 = vpop.f32.mrf.mxu0
        %v1834 = vadd.f32 %v1674, %v1833
        %v1835 = vpop.f32.mrf.mxu0
        %1836 = vmatprep.mubr.bf16.mxu0 %v1254
        %1837 = vmatmul.mubr.bf16.gmra.mxu0 %v1253
        %v1838 = vpop.f32.mrf.mxu0
        %v1839 = vadd.f32 %v1674, %v1838
        %v1840 = vpop.f32.mrf.mxu0
        %v1841 = vpop.f32.mrf.mxu0
        %v1842 = vadd.f32 %v1674, %v1841
        %v1843 = vpop.f32.mrf.mxu0
        %1844 = vmatprep.mubr.bf16.mxu0 %v1256
        %1845 = vmatmul.mubr.bf16.gmra.mxu0 %v1255
        %v1846 = vpop.f32.mrf.mxu0
        %v1847 = vadd.f32 %v1674, %v1846
        %v1848 = vpop.f32.mrf.mxu0
        %v1849 = vpop.f32.mrf.mxu0
        %v1850 = vadd.f32 %v1674, %v1849
        %v1851 = vpop.f32.mrf.mxu0
        %1852 = vmatprep.mubr.bf16.mxu0 %v1258
        %1853 = vmatmul.mubr.bf16.gmra.mxu0 %v1257
        %v1854 = vpop.f32.mrf.mxu0
        %v1855 = vadd.f32 %v1674, %v1854
        %v1856 = vpop.f32.mrf.mxu0
        %v1857 = vpop.f32.mrf.mxu0
        %v1858 = vadd.f32 %v1674, %v1857
        %v1859 = vpop.f32.mrf.mxu0
        %1860 = vmatprep.mubr.bf16.mxu0 %v1260
        %1861 = vmatmul.mubr.bf16.gmra.mxu0 %v1259
        %v1862 = vpop.f32.mrf.mxu0
        %v1863 = vadd.f32 %v1674, %v1862
        %v1864 = vpop.f32.mrf.mxu0
        %v1865 = vpop.f32.mrf.mxu0
        %v1866 = vadd.f32 %v1674, %v1865
        %v1867 = vpop.f32.mrf.mxu0
        %1868 = vmatprep.mubr.bf16.mxu0 %v1262
        %1869 = vmatmul.mubr.bf16.gmra.mxu0 %v1261
        %v1870 = vpop.f32.mrf.mxu0
        %v1871 = vadd.f32 %v1674, %v1870
        %v1872 = vpop.f32.mrf.mxu0
        %v1873 = vpop.f32.mrf.mxu0
        %v1874 = vadd.f32 %v1674, %v1873
        %v1875 = vpop.f32.mrf.mxu0
        %1876 = vmatprep.mubr.bf16.mxu0 %v1264
        %1877 = vmatmul.mubr.bf16.gmra.mxu0 %v1263
        %v1878 = vpop.f32.mrf.mxu0
        %v1879 = vadd.f32 %v1674, %v1878
        %v1880 = vpop.f32.mrf.mxu0
        %v1881 = vpop.f32.mrf.mxu0
        %v1882 = vadd.f32 %v1674, %v1881
        %v1883 = vpop.f32.mrf.mxu0
        %1884 = vmatprep.mubr.bf16.mxu0 %v1266
        %1885 = vmatmul.mubr.bf16.gmra.mxu0 %v1265
        %v1886 = vpop.f32.mrf.mxu0
        %v1887 = vadd.f32 %v1674, %v1886
        %v1888 = vpop.f32.mrf.mxu0
        %v1889 = vpop.f32.mrf.mxu0
        %v1890 = vadd.f32 %v1674, %v1889
        %v1891 = vpop.f32.mrf.mxu0
        %1892 = vmatprep.mubr.bf16.mxu0 %v1268
        %1893 = vmatmul.mubr.bf16.gmra.mxu0 %v1267
        %v1894 = vpop.f32.mrf.mxu0
        %v1895 = vadd.f32 %v1674, %v1894
        %v1896 = vpop.f32.mrf.mxu0
        %v1897 = vpop.f32.mrf.mxu0
        %v1898 = vadd.f32 %v1674, %v1897
        %v1899 = vpop.f32.mrf.mxu0
        %1900 = vmatprep.mubr.bf16.mxu0 %v1270
        %1901 = vmatmul.mubr.bf16.gmra.mxu0 %v1269
        %v1902 = vpop.f32.mrf.mxu0
        %v1903 = vadd.f32 %v1674, %v1902
        %v1904 = vpop.f32.mrf.mxu0
        %v1905 = vpop.f32.mrf.mxu0
        %v1906 = vadd.f32 %v1674, %v1905
        %v1907 = vpop.f32.mrf.mxu0
        %1908 = vmatprep.mubr.bf16.mxu0 %v1272
        %1909 = vmatmul.mubr.bf16.gmra.mxu0 %v1271
        %v1910 = vpop.f32.mrf.mxu0
        %v1911 = vadd.f32 %v1674, %v1910
        %v1912 = vpop.f32.mrf.mxu0
        %v1913 = vpop.f32.mrf.mxu0
        %v1914 = vadd.f32 %v1674, %v1913
        %v1915 = vpop.f32.mrf.mxu0
        %1916 = vmatprep.mubr.bf16.mxu0 %v1274
        %1917 = vmatmul.mubr.bf16.gmra.mxu0 %v1273
        %v1918 = vpop.f32.mrf.mxu0
        %v1919 = vadd.f32 %v1674, %v1918
        %v1920 = vpop.f32.mrf.mxu0
        %v1921 = vpop.f32.mrf.mxu0
        %v1922 = vadd.f32 %v1674, %v1921
        %v1923 = vpop.f32.mrf.mxu0
        %1924 = vmatprep.mubr.bf16.mxu0 %v1276
        %1925 = vmatmul.mubr.bf16.gmra.mxu0 %v1275
        %v1926 = vpop.f32.mrf.mxu0
        %v1927 = vadd.f32 %v1674, %v1926
        %v1928 = vpop.f32.mrf.mxu0
        %v1929 = vpop.f32.mrf.mxu0
        %v1930 = vadd.f32 %v1674, %v1929
        %v1931 = vpop.f32.mrf.mxu0
        %1932 = vdwg.mxu0
        %v1933 = vmax.f32 %v1807, 0.0
        %v1934 = vmax.f32 %v1810, 0.0
        %v1935 = vmax.f32 %v1815, 0.0
        %v1936 = vmax.f32 %v1818, 0.0
        %v1937 = vmax.f32 %v1823, 0.0
        %v1938 = vmax.f32 %v1826, 0.0
        %v1939 = vmax.f32 %v1831, 0.0
        %v1940 = vmax.f32 %v1834, 0.0
        %v1941 = vmax.f32 %v1839, 0.0
        %v1942 = vmax.f32 %v1842, 0.0
        %v1943 = vmax.f32 %v1847, 0.0
        %v1944 = vmax.f32 %v1850, 0.0
        %v1945 = vmax.f32 %v1855, 0.0
        %v1946 = vmax.f32 %v1858, 0.0
        %v1947 = vmax.f32 %v1863, 0.0
        %v1948 = vmax.f32 %v1866, 0.0
        %v1949 = vmax.f32 %v1871, 0.0
        %v1950 = vmax.f32 %v1874, 0.0
        %v1951 = vmax.f32 %v1879, 0.0
        %v1952 = vmax.f32 %v1882, 0.0
        %v1953 = vmax.f32 %v1887, 0.0
        %v1954 = vmax.f32 %v1890, 0.0
        %v1955 = vmax.f32 %v1895, 0.0
        %v1956 = vmax.f32 %v1898, 0.0
        %v1957 = vmax.f32 %v1903, 0.0
        %v1958 = vmax.f32 %v1906, 0.0
        %v1959 = vmax.f32 %v1911, 0.0
        %v1960 = vmax.f32 %v1914, 0.0
        %v1961 = vmax.f32 %v1919, 0.0
        %v1962 = vmax.f32 %v1922, 0.0
        %v1963 = vmax.f32 %v1927, 0.0
        %v1964 = vmax.f32 %v1930, 0.0
        %v1965 = vpack.c.bf16 %v1934, %v1933
        %v1966 = vpack.c.bf16 %v1936, %v1935
        %v1967 = vpack.c.bf16 %v1938, %v1937
        %v1968 = vpack.c.bf16 %v1940, %v1939
        %v1969 = vpack.c.bf16 %v1942, %v1941
        %v1970 = vpack.c.bf16 %v1944, %v1943
        %v1971 = vpack.c.bf16 %v1946, %v1945
        %v1972 = vpack.c.bf16 %v1948, %v1947
        %v1973 = vpack.c.bf16 %v1950, %v1949
        %v1974 = vpack.c.bf16 %v1952, %v1951
        %v1975 = vpack.c.bf16 %v1954, %v1953
        %v1976 = vpack.c.bf16 %v1956, %v1955
        %v1977 = vpack.c.bf16 %v1958, %v1957
        %v1978 = vpack.c.bf16 %v1960, %v1959
        %v1979 = vpack.c.bf16 %v1962, %v1961
        %v1980 = vpack.c.bf16 %v1964, %v1963
        %v1981 = vld [vmem:[%s5 + $0x40] sm:$0xf]
        %v1982 = vld [vmem:[%s5 + $0x44] sm:$0xf]
        %v1983 = vld [vmem:[%s5 + $0x48] sm:$0xf]
        %v1984 = vld [vmem:[%s5 + $0x4c] sm:$0xf]
        %v1985 = vld [vmem:[%s5 + $0x50] sm:$0xf]
        %v1986 = vld [vmem:[%s5 + $0x54] sm:$0xf]
        %v1987 = vld [vmem:[%s5 + $0x58] sm:$0xf]
        %v1988 = vld [vmem:[%s5 + $0x5c] sm:$0xf]
        %v1989 = vld [vmem:[%s5 + $0x60] sm:$0xf]
        %v1990 = vld [vmem:[%s5 + $0x64] sm:$0xf]
        %v1991 = vld [vmem:[%s5 + $0x68] sm:$0xf]
        %v1992 = vld [vmem:[%s5 + $0x6c] sm:$0xf]
        %v1993 = vld [vmem:[%s5 + $0x70] sm:$0xf]
        %v1994 = vld [vmem:[%s5 + $0x74] sm:$0xf]
        %v1995 = vld [vmem:[%s5 + $0x78] sm:$0xf]
        %v1996 = vld [vmem:[%s5 + $0x7c] sm:$0xf]
        %v2013 = vunpack.c.l.b16 %v1981
        %v2014 = vunpack.c.l.b16 %v1982
        %v2015 = vunpack.c.l.b16 %v1983
        %v2016 = vunpack.c.l.b16 %v1984
        %v2017 = vunpack.c.l.b16 %v1985
        %v2018 = vunpack.c.l.b16 %v1986
        %v2019 = vunpack.c.l.b16 %v1987
        %v2020 = vunpack.c.l.b16 %v1988
        %v2021 = vunpack.c.l.b16 %v1989
        %v2022 = vunpack.c.l.b16 %v1990
        %v2023 = vunpack.c.l.b16 %v1991
        %v2024 = vunpack.c.l.b16 %v1992
        %v2025 = vunpack.c.l.b16 %v1993
        %v2026 = vunpack.c.l.b16 %v1994
        %v2027 = vunpack.c.l.b16 %v1995
        %v2028 = vunpack.c.l.b16 %v1996
        %v2029 = vpack.c.b16 %v2014, %v2013
        %v2030 = vpack.c.b16 %v2016, %v2015
        %v2031 = vpack.c.b16 %v2018, %v2017
        %v2032 = vpack.c.b16 %v2020, %v2019
        %v2033 = vpack.c.b16 %v2022, %v2021
        %v2034 = vpack.c.b16 %v2024, %v2023
        %v2035 = vpack.c.b16 %v2026, %v2025
        %v2036 = vpack.c.b16 %v2028, %v2027
        %2045 = vmatprep.subr.bf16.mxu0 0
        %2046 = vmatpush1.bf16.msra.mxu0 %v2036
        %2047 = vmatprep.subr.bf16.mxu0 0
        %2048 = vmatpush1.bf16.msra.mxu0 %v2035
        %2049 = vmatprep.subr.bf16.mxu0 0
        %2050 = vmatpush1.bf16.msra.mxu0 %v2034
        %2051 = vmatprep.subr.bf16.mxu0 0
        %2052 = vmatpush1.bf16.msra.mxu0 %v2033
        %2053 = vmatprep.subr.bf16.mxu0 0
        %2054 = vmatpush1.bf16.msra.mxu0 %v2032
        %2055 = vmatprep.subr.bf16.mxu0 0
        %2056 = vmatpush1.bf16.msra.mxu0 %v2031
        %2057 = vmatprep.subr.bf16.mxu0 0
        %2058 = vmatpush1.bf16.msra.mxu0 %v2030
        %2059 = vmatprep.subr.bf16.mxu0 0
        %2060 = vmatpush1.bf16.msra.mxu0 %v2029
        %2061 = vmatprep.subr.bf16.mxu0 0
        %2062 = vmatpush2.bf16.msra.mxu0 0
        %2063 = vmatprep.subr.bf16.mxu0 0
        %2064 = vmatpush2.bf16.msra.mxu0 0
        %2065 = vmatprep.subr.bf16.mxu0 0
        %2066 = vmatpush2.bf16.msra.mxu0 0
        %2067 = vmatprep.subr.bf16.mxu0 0
        %2068 = vmatpush2.bf16.msra.mxu0 0
        %2069 = vmatprep.subr.bf16.mxu0 0
        %2070 = vmatpush2.bf16.msra.mxu0 0
        %2071 = vmatprep.subr.bf16.mxu0 0
        %2072 = vmatpush2.bf16.msra.mxu0 0
        %2073 = vmatprep.subr.bf16.mxu0 0
        %2074 = vmatpush2.bf16.msra.mxu0 0
        %2075 = vmatprep.subr.bf16.mxu0 0
        %2076 = vmatpush2.bf16.msra.mxu0 0
        %2077 = vmatprep.mubr.bf16.mxu0 0
        %2078 = vmatmul.mubr.bf16.gmra.mxu0 %v1965
        %v2079 = vpop.f32.mrf.mxu0
        %v2080 = vadd.f32 0.0, %v2079
        %v2081 = vpop.f32.mrf.mxu0
        %v2082 = vpop.f32.mrf.mxu0
        %v2083 = vadd.f32 0.0, %v2082
        %v2084 = vpop.f32.mrf.mxu0
        %2085 = vmatprep.mubr.bf16.mxu0 0
        %2086 = vmatmul.mubr.bf16.gmra.mxu0 %v1966
        %v2087 = vpop.f32.mrf.mxu0
        %v2088 = vadd.f32 0.0, %v2087
        %v2089 = vpop.f32.mrf.mxu0
        %v2090 = vpop.f32.mrf.mxu0
        %v2091 = vadd.f32 0.0, %v2090
        %v2092 = vpop.f32.mrf.mxu0
        %2093 = vmatprep.mubr.bf16.mxu0 0
        %2094 = vmatmul.mubr.bf16.gmra.mxu0 %v1967
        %v2095 = vpop.f32.mrf.mxu0
        %v2096 = vadd.f32 0.0, %v2095
        %v2097 = vpop.f32.mrf.mxu0
        %v2098 = vpop.f32.mrf.mxu0
        %v2099 = vadd.f32 0.0, %v2098
        %v2100 = vpop.f32.mrf.mxu0
        %2101 = vmatprep.mubr.bf16.mxu0 0
        %2102 = vmatmul.mubr.bf16.gmra.mxu0 %v1968
        %v2103 = vpop.f32.mrf.mxu0
        %v2104 = vadd.f32 0.0, %v2103
        %v2105 = vpop.f32.mrf.mxu0
        %v2106 = vpop.f32.mrf.mxu0
        %v2107 = vadd.f32 0.0, %v2106
        %v2108 = vpop.f32.mrf.mxu0
        %2109 = vmatprep.mubr.bf16.mxu0 0
        %2110 = vmatmul.mubr.bf16.gmra.mxu0 %v1969
        %v2111 = vpop.f32.mrf.mxu0
        %v2112 = vadd.f32 0.0, %v2111
        %v2113 = vpop.f32.mrf.mxu0
        %v2114 = vpop.f32.mrf.mxu0
        %v2115 = vadd.f32 0.0, %v2114
        %v2116 = vpop.f32.mrf.mxu0
        %2117 = vmatprep.mubr.bf16.mxu0 0
        %2118 = vmatmul.mubr.bf16.gmra.mxu0 %v1970
        %v2119 = vpop.f32.mrf.mxu0
        %v2120 = vadd.f32 0.0, %v2119
        %v2121 = vpop.f32.mrf.mxu0
        %v2122 = vpop.f32.mrf.mxu0
        %v2123 = vadd.f32 0.0, %v2122
        %v2124 = vpop.f32.mrf.mxu0
        %2125 = vmatprep.mubr.bf16.mxu0 0
        %2126 = vmatmul.mubr.bf16.gmra.mxu0 %v1971
        %v2127 = vpop.f32.mrf.mxu0
        %v2128 = vadd.f32 0.0, %v2127
        %v2129 = vpop.f32.mrf.mxu0
        %v2130 = vpop.f32.mrf.mxu0
        %v2131 = vadd.f32 0.0, %v2130
        %v2132 = vpop.f32.mrf.mxu0
        %2133 = vmatprep.mubr.bf16.mxu0 0
        %2134 = vmatmul.mubr.bf16.gmra.mxu0 %v1972
        %v2135 = vpop.f32.mrf.mxu0
        %v2136 = vadd.f32 0.0, %v2135
        %v2137 = vpop.f32.mrf.mxu0
        %v2138 = vpop.f32.mrf.mxu0
        %v2139 = vadd.f32 0.0, %v2138
        %v2140 = vpop.f32.mrf.mxu0
        %2141 = vmatprep.mubr.bf16.mxu0 0
        %2142 = vmatmul.mubr.bf16.gmra.mxu0 %v1973
        %v2143 = vpop.f32.mrf.mxu0
        %v2144 = vadd.f32 0.0, %v2143
        %v2145 = vpop.f32.mrf.mxu0
        %v2146 = vpop.f32.mrf.mxu0
        %v2147 = vadd.f32 0.0, %v2146
        %v2148 = vpop.f32.mrf.mxu0
        %2149 = vmatprep.mubr.bf16.mxu0 0
        %2150 = vmatmul.mubr.bf16.gmra.mxu0 %v1974
        %v2151 = vpop.f32.mrf.mxu0
        %v2152 = vadd.f32 0.0, %v2151
        %v2153 = vpop.f32.mrf.mxu0
        %v2154 = vpop.f32.mrf.mxu0
        %v2155 = vadd.f32 0.0, %v2154
        %v2156 = vpop.f32.mrf.mxu0
        %2157 = vmatprep.mubr.bf16.mxu0 0
        %2158 = vmatmul.mubr.bf16.gmra.mxu0 %v1975
        %v2159 = vpop.f32.mrf.mxu0
        %v2160 = vadd.f32 0.0, %v2159
        %v2161 = vpop.f32.mrf.mxu0
        %v2162 = vpop.f32.mrf.mxu0
        %v2163 = vadd.f32 0.0, %v2162
        %v2164 = vpop.f32.mrf.mxu0
        %2165 = vmatprep.mubr.bf16.mxu0 0
        %2166 = vmatmul.mubr.bf16.gmra.mxu0 %v1976
        %v2167 = vpop.f32.mrf.mxu0
        %v2168 = vadd.f32 0.0, %v2167
        %v2169 = vpop.f32.mrf.mxu0
        %v2170 = vpop.f32.mrf.mxu0
        %v2171 = vadd.f32 0.0, %v2170
        %v2172 = vpop.f32.mrf.mxu0
        %2173 = vmatprep.mubr.bf16.mxu0 0
        %2174 = vmatmul.mubr.bf16.gmra.mxu0 %v1977
        %v2175 = vpop.f32.mrf.mxu0
        %v2176 = vadd.f32 0.0, %v2175
        %v2177 = vpop.f32.mrf.mxu0
        %v2178 = vpop.f32.mrf.mxu0
        %v2179 = vadd.f32 0.0, %v2178
        %v2180 = vpop.f32.mrf.mxu0
        %2181 = vmatprep.mubr.bf16.mxu0 0
        %2182 = vmatmul.mubr.bf16.gmra.mxu0 %v1978
        %v2183 = vpop.f32.mrf.mxu0
        %v2184 = vadd.f32 0.0, %v2183
        %v2185 = vpop.f32.mrf.mxu0
        %v2186 = vpop.f32.mrf.mxu0
        %v2187 = vadd.f32 0.0, %v2186
        %v2188 = vpop.f32.mrf.mxu0
        %2189 = vmatprep.mubr.bf16.mxu0 0
        %2190 = vmatmul.mubr.bf16.gmra.mxu0 %v1979
        %v2191 = vpop.f32.mrf.mxu0
        %v2192 = vadd.f32 0.0, %v2191
        %v2193 = vpop.f32.mrf.mxu0
        %v2194 = vpop.f32.mrf.mxu0
        %v2195 = vadd.f32 0.0, %v2194
        %v2196 = vpop.f32.mrf.mxu0
        %2197 = vmatprep.mubr.bf16.mxu0 0
        %2198 = vmatmul.mubr.bf16.gmra.mxu0 %v1980
        %v2199 = vpop.f32.mrf.mxu0
        %v2200 = vadd.f32 0.0, %v2199
        %v2201 = vpop.f32.mrf.mxu0
        %v2202 = vpop.f32.mrf.mxu0
        %v2203 = vadd.f32 0.0, %v2202
        %v2204 = vpop.f32.mrf.mxu0
        %2205 = vdwg.mxu0
        %v2222 = vunpack.c.l.b16 %v1621
        %v2223 = vunpack.c.l.b16 %v1622
        %v2224 = vunpack.c.l.b16 %v1623
        %v2225 = vunpack.c.l.b16 %v1624
        %v2226 = vunpack.c.l.b16 %v1625
        %v2227 = vunpack.c.l.b16 %v1626
        %v2228 = vunpack.c.l.b16 %v1627
        %v2229 = vunpack.c.l.b16 %v1628
        %v2230 = vunpack.c.l.b16 %v1629
        %v2231 = vunpack.c.l.b16 %v1630
        %v2232 = vunpack.c.l.b16 %v1631
        %v2233 = vunpack.c.l.b16 %v1632
        %v2234 = vunpack.c.l.b16 %v1633
        %v2235 = vunpack.c.l.b16 %v1634
        %v2236 = vunpack.c.l.b16 %v1635
        %v2237 = vunpack.c.l.b16 %v1636
        %v2238 = vpack.c.b16 %v2223, %v2222
        %v2239 = vpack.c.b16 %v2225, %v2224
        %v2240 = vpack.c.b16 %v2227, %v2226
        %v2241 = vpack.c.b16 %v2229, %v2228
        %v2242 = vpack.c.b16 %v2231, %v2230
        %v2243 = vpack.c.b16 %v2233, %v2232
        %v2244 = vpack.c.b16 %v2235, %v2234
        %v2245 = vpack.c.b16 %v2237, %v2236
        %2254 = vmatprep.subr.bf16.mxu0 0
        %2255 = vmatpush1.bf16.msra.mxu0 %v2245
        %2256 = vmatprep.subr.bf16.mxu0 0
        %2257 = vmatpush1.bf16.msra.mxu0 %v2244
        %2258 = vmatprep.subr.bf16.mxu0 0
        %2259 = vmatpush1.bf16.msra.mxu0 %v2243
        %2260 = vmatprep.subr.bf16.mxu0 0
        %2261 = vmatpush1.bf16.msra.mxu0 %v2242
        %2262 = vmatprep.subr.bf16.mxu0 0
        %2263 = vmatpush1.bf16.msra.mxu0 %v2241
        %2264 = vmatprep.subr.bf16.mxu0 0
        %2265 = vmatpush1.bf16.msra.mxu0 %v2240
        %2266 = vmatprep.subr.bf16.mxu0 0
        %2267 = vmatpush1.bf16.msra.mxu0 %v2239
        %2268 = vmatprep.subr.bf16.mxu0 0
        %2269 = vmatpush1.bf16.msra.mxu0 %v2238
        %2270 = vmatprep.subr.bf16.mxu0 0
        %2271 = vmatpush2.bf16.msra.mxu0 0
        %2272 = vmatprep.subr.bf16.mxu0 0
        %2273 = vmatpush2.bf16.msra.mxu0 0
        %2274 = vmatprep.subr.bf16.mxu0 0
        %2275 = vmatpush2.bf16.msra.mxu0 0
        %2276 = vmatprep.subr.bf16.mxu0 0
        %2277 = vmatpush2.bf16.msra.mxu0 0
        %2278 = vmatprep.subr.bf16.mxu0 0
        %2279 = vmatpush2.bf16.msra.mxu0 0
        %2280 = vmatprep.subr.bf16.mxu0 0
        %2281 = vmatpush2.bf16.msra.mxu0 0
        %2282 = vmatprep.subr.bf16.mxu0 0
        %2283 = vmatpush2.bf16.msra.mxu0 0
        %2284 = vmatprep.subr.bf16.mxu0 0
        %2285 = vmatpush2.bf16.msra.mxu0 0
        %2286 = vmatprep.mubr.bf16.mxu0 0
        %2287 = vmatmul.mubr.bf16.gmra.mxu0 %v1605
        %v2288 = vpop.f32.mrf.mxu0
        %v2289 = vadd.f32 %v2080, %v2288
        %v2290 = vpop.f32.mrf.mxu0
        %v2291 = vpop.f32.mrf.mxu0
        %v2292 = vadd.f32 %v2083, %v2291
        %v2293 = vpop.f32.mrf.mxu0
        %2294 = vmatprep.mubr.bf16.mxu0 0
        %2295 = vmatmul.mubr.bf16.gmra.mxu0 %v1606
        %v2296 = vpop.f32.mrf.mxu0
        %v2297 = vadd.f32 %v2088, %v2296
        %v2298 = vpop.f32.mrf.mxu0
        %v2299 = vpop.f32.mrf.mxu0
        %v2300 = vadd.f32 %v2091, %v2299
        %v2301 = vpop.f32.mrf.mxu0
        %2302 = vmatprep.mubr.bf16.mxu0 0
        %2303 = vmatmul.mubr.bf16.gmra.mxu0 %v1607
        %v2304 = vpop.f32.mrf.mxu0
        %v2305 = vadd.f32 %v2096, %v2304
        %v2306 = vpop.f32.mrf.mxu0
        %v2307 = vpop.f32.mrf.mxu0
        %v2308 = vadd.f32 %v2099, %v2307
        %v2309 = vpop.f32.mrf.mxu0
        %2310 = vmatprep.mubr.bf16.mxu0 0
        %2311 = vmatmul.mubr.bf16.gmra.mxu0 %v1608
        %v2312 = vpop.f32.mrf.mxu0
        %v2313 = vadd.f32 %v2104, %v2312
        %v2314 = vpop.f32.mrf.mxu0
        %v2315 = vpop.f32.mrf.mxu0
        %v2316 = vadd.f32 %v2107, %v2315
        %v2317 = vpop.f32.mrf.mxu0
        %2318 = vmatprep.mubr.bf16.mxu0 0
        %2319 = vmatmul.mubr.bf16.gmra.mxu0 %v1609
        %v2320 = vpop.f32.mrf.mxu0
        %v2321 = vadd.f32 %v2112, %v2320
        %v2322 = vpop.f32.mrf.mxu0
        %v2323 = vpop.f32.mrf.mxu0
        %v2324 = vadd.f32 %v2115, %v2323
        %v2325 = vpop.f32.mrf.mxu0
        %2326 = vmatprep.mubr.bf16.mxu0 0
        %2327 = vmatmul.mubr.bf16.gmra.mxu0 %v1610
        %v2328 = vpop.f32.mrf.mxu0
        %v2329 = vadd.f32 %v2120, %v2328
        %v2330 = vpop.f32.mrf.mxu0
        %v2331 = vpop.f32.mrf.mxu0
        %v2332 = vadd.f32 %v2123, %v2331
        %v2333 = vpop.f32.mrf.mxu0
        %2334 = vmatprep.mubr.bf16.mxu0 0
        %2335 = vmatmul.mubr.bf16.gmra.mxu0 %v1611
        %v2336 = vpop.f32.mrf.mxu0
        %v2337 = vadd.f32 %v2128, %v2336
        %v2338 = vpop.f32.mrf.mxu0
        %v2339 = vpop.f32.mrf.mxu0
        %v2340 = vadd.f32 %v2131, %v2339
        %v2341 = vpop.f32.mrf.mxu0
        %2342 = vmatprep.mubr.bf16.mxu0 0
        %2343 = vmatmul.mubr.bf16.gmra.mxu0 %v1612
        %v2344 = vpop.f32.mrf.mxu0
        %v2345 = vadd.f32 %v2136, %v2344
        %v2346 = vpop.f32.mrf.mxu0
        %v2347 = vpop.f32.mrf.mxu0
        %v2348 = vadd.f32 %v2139, %v2347
        %v2349 = vpop.f32.mrf.mxu0
        %2350 = vmatprep.mubr.bf16.mxu0 0
        %2351 = vmatmul.mubr.bf16.gmra.mxu0 %v1613
        %v2352 = vpop.f32.mrf.mxu0
        %v2353 = vadd.f32 %v2144, %v2352
        %v2354 = vpop.f32.mrf.mxu0
        %v2355 = vpop.f32.mrf.mxu0
        %v2356 = vadd.f32 %v2147, %v2355
        %v2357 = vpop.f32.mrf.mxu0
        %2358 = vmatprep.mubr.bf16.mxu0 0
        %2359 = vmatmul.mubr.bf16.gmra.mxu0 %v1614
        %v2360 = vpop.f32.mrf.mxu0
        %v2361 = vadd.f32 %v2152, %v2360
        %v2362 = vpop.f32.mrf.mxu0
        %v2363 = vpop.f32.mrf.mxu0
        %v2364 = vadd.f32 %v2155, %v2363
        %v2365 = vpop.f32.mrf.mxu0
        %2366 = vmatprep.mubr.bf16.mxu0 0
        %2367 = vmatmul.mubr.bf16.gmra.mxu0 %v1615
        %v2368 = vpop.f32.mrf.mxu0
        %v2369 = vadd.f32 %v2160, %v2368
        %v2370 = vpop.f32.mrf.mxu0
        %v2371 = vpop.f32.mrf.mxu0
        %v2372 = vadd.f32 %v2163, %v2371
        %v2373 = vpop.f32.mrf.mxu0
        %2374 = vmatprep.mubr.bf16.mxu0 0
        %2375 = vmatmul.mubr.bf16.gmra.mxu0 %v1616
        %v2376 = vpop.f32.mrf.mxu0
        %v2377 = vadd.f32 %v2168, %v2376
        %v2378 = vpop.f32.mrf.mxu0
        %v2379 = vpop.f32.mrf.mxu0
        %v2380 = vadd.f32 %v2171, %v2379
        %v2381 = vpop.f32.mrf.mxu0
        %2382 = vmatprep.mubr.bf16.mxu0 0
        %2383 = vmatmul.mubr.bf16.gmra.mxu0 %v1617
        %v2384 = vpop.f32.mrf.mxu0
        %v2385 = vadd.f32 %v2176, %v2384
        %v2386 = vpop.f32.mrf.mxu0
        %v2387 = vpop.f32.mrf.mxu0
        %v2388 = vadd.f32 %v2179, %v2387
        %v2389 = vpop.f32.mrf.mxu0
        %2390 = vmatprep.mubr.bf16.mxu0 0
        %2391 = vmatmul.mubr.bf16.gmra.mxu0 %v1618
        %v2392 = vpop.f32.mrf.mxu0
        %v2393 = vadd.f32 %v2184, %v2392
        %v2394 = vpop.f32.mrf.mxu0
        %v2395 = vpop.f32.mrf.mxu0
        %v2396 = vadd.f32 %v2187, %v2395
        %v2397 = vpop.f32.mrf.mxu0
        %2398 = vmatprep.mubr.bf16.mxu0 0
        %2399 = vmatmul.mubr.bf16.gmra.mxu0 %v1619
        %v2400 = vpop.f32.mrf.mxu0
        %v2401 = vadd.f32 %v2192, %v2400
        %v2402 = vpop.f32.mrf.mxu0
        %v2403 = vpop.f32.mrf.mxu0
        %v2404 = vadd.f32 %v2195, %v2403
        %v2405 = vpop.f32.mrf.mxu0
        %2406 = vmatprep.mubr.bf16.mxu0 0
        %2407 = vmatmul.mubr.bf16.gmra.mxu0 %v1620
        %v2408 = vpop.f32.mrf.mxu0
        %v2409 = vadd.f32 %v2200, %v2408
        %v2410 = vpop.f32.mrf.mxu0
        %v2411 = vpop.f32.mrf.mxu0
        %v2412 = vadd.f32 %v2203, %v2411
        %v2413 = vpop.f32.mrf.mxu0
        %2414 = vdwg.mxu0
        %v2415 = vld [vmem:[%s6] sm:$0x1]
        %v2417 = vlaneseq
        %v2418 = vshrl.u32 %v2417, 7
        %v2419 = vsub.s32 0, %v2418
        %v2420 = vrot.slane %v2415, %v2419
        %v2422 = vadd.f32 %v2289, %v2420
        %v2423 = vadd.f32 %v2292, %v2420
        %v2424 = vadd.f32 %v2297, %v2420
        %v2425 = vadd.f32 %v2300, %v2420
        %v2426 = vadd.f32 %v2305, %v2420
        %v2427 = vadd.f32 %v2308, %v2420
        %v2428 = vadd.f32 %v2313, %v2420
        %v2429 = vadd.f32 %v2316, %v2420
        %v2430 = vadd.f32 %v2321, %v2420
        %v2431 = vadd.f32 %v2324, %v2420
        %v2432 = vadd.f32 %v2329, %v2420
        %v2433 = vadd.f32 %v2332, %v2420
        %v2434 = vadd.f32 %v2337, %v2420
        %v2435 = vadd.f32 %v2340, %v2420
        %v2436 = vadd.f32 %v2345, %v2420
        %v2437 = vadd.f32 %v2348, %v2420
        %v2438 = vadd.f32 %v2353, %v2420
        %v2439 = vadd.f32 %v2356, %v2420
        %v2440 = vadd.f32 %v2361, %v2420
        %v2441 = vadd.f32 %v2364, %v2420
        %v2442 = vadd.f32 %v2369, %v2420
        %v2443 = vadd.f32 %v2372, %v2420
        %v2444 = vadd.f32 %v2377, %v2420
        %v2445 = vadd.f32 %v2380, %v2420
        %v2446 = vadd.f32 %v2385, %v2420
        %v2447 = vadd.f32 %v2388, %v2420
        %v2448 = vadd.f32 %v2393, %v2420
        %v2449 = vadd.f32 %v2396, %v2420
        %v2450 = vadd.f32 %v2401, %v2420
        %v2451 = vadd.f32 %v2404, %v2420
        %v2452 = vadd.f32 %v2409, %v2420
        %v2453 = vadd.f32 %v2412, %v2420
        %2454 = vst [vmem:[%s272] sm:$0xff] %v2422
        %2455 = vst [vmem:[%s272 + $0x8] sm:$0xff] %v2423
        %2456 = vst [vmem:[%s272 + $0x10] sm:$0xff] %v2424
        %2457 = vst [vmem:[%s272 + $0x18] sm:$0xff] %v2425
        %2458 = vst [vmem:[%s272 + $0x20] sm:$0xff] %v2426
        %2459 = vst [vmem:[%s272 + $0x28] sm:$0xff] %v2427
        %2460 = vst [vmem:[%s272 + $0x30] sm:$0xff] %v2428
        %2461 = vst [vmem:[%s272 + $0x38] sm:$0xff] %v2429
        %2462 = vst [vmem:[%s272 + $0x40] sm:$0xff] %v2430
        %2463 = vst [vmem:[%s272 + $0x48] sm:$0xff] %v2431
        %2464 = vst [vmem:[%s272 + $0x50] sm:$0xff] %v2432
        %2465 = vst [vmem:[%s272 + $0x58] sm:$0xff] %v2433
        %2466 = vst [vmem:[%s272 + $0x60] sm:$0xff] %v2434
        %2467 = vst [vmem:[%s272 + $0x68] sm:$0xff] %v2435
        %2468 = vst [vmem:[%s272 + $0x70] sm:$0xff] %v2436
        %2469 = vst [vmem:[%s272 + $0x78] sm:$0xff] %v2437
        %2470 = vst [vmem:[%s272 + $0x80] sm:$0xff] %v2438
        %2471 = vst [vmem:[%s272 + $0x88] sm:$0xff] %v2439
        %2472 = vst [vmem:[%s272 + $0x90] sm:$0xff] %v2440
        %2473 = vst [vmem:[%s272 + $0x98] sm:$0xff] %v2441
        %2474 = vst [vmem:[%s272 + $0xa0] sm:$0xff] %v2442
        %2475 = vst [vmem:[%s272 + $0xa8] sm:$0xff] %v2443
        %2476 = vst [vmem:[%s272 + $0xb0] sm:$0xff] %v2444
        %2477 = vst [vmem:[%s272 + $0xb8] sm:$0xff] %v2445
        %2478 = vst [vmem:[%s272 + $0xc0] sm:$0xff] %v2446
        %2479 = vst [vmem:[%s272 + $0xc8] sm:$0xff] %v2447
        %2480 = vst [vmem:[%s272 + $0xd0] sm:$0xff] %v2448
        %2481 = vst [vmem:[%s272 + $0xd8] sm:$0xff] %v2449
        %2482 = vst [vmem:[%s272 + $0xe0] sm:$0xff] %v2450
        %2483 = vst [vmem:[%s272 + $0xe8] sm:$0xff] %v2451
        %2484 = vst [vmem:[%s272 + $0xf0] sm:$0xff] %v2452
        %2485 = vst [vmem:[%s272 + $0xf8] sm:$0xff] %v2453
        %s2486 = sand.u32 %s181, 1
        %s2487 = scalar_lea.sflag [#allocation3], %s2486
        %s2488 = sand.u32 %s181, 1
        %s2489 = smul.addr %s2488, 256
        %s2490 = scalar_lea.vmem [#allocation2], %s2489
        // Predicated region
        $region49: #{tpu_custom_call.1} parent=47 // pred_check
          %p2491 = pneg %p191
        $region50: #{tpu_custom_call.1} parent=47 // pred_check_branch
          %2493 = sbr.rel (%p2491) target = $region52
        $region51: #{tpu_custom_call.1} parent=47 // pred_region
          %s2494 = smul.u32 32, %s21
          %s2496 = ssub.s32 4096, 4096
          %2497 = vsyncadd %s2487, %s2496
          %s2498 = smul.addr %s2494, 128
          %s2499 = scalar_lea.hbm %s7, %s2498
          %s2500 = sshll.u32 %s2490, 4
          %s2501 = int_to_ptr.vmem [resolvable:$true] %s2500
          %2506 = dma.vmem_to_hbm [thread:$0]  %s2501, 4096, %s2499, %s2487, 128, 128, 8
        $region52: #{tpu_custom_call.1} parent=47 // pred_fallthru
          _
      $region48: #{tpu_custom_call.1} parent=5 // pred_fallthru
        _
      %p2507 = scmp.le.s32.totalorder 2, %s16
      // Predicated region
      $region53: #{tpu_custom_call.1} parent=5 // pred_check
        %p2508 = pneg %p2507
      $region54: #{tpu_custom_call.1} parent=5 // pred_check_branch
        %2510 = sbr.rel (%p2508) target = $region56
      $region55: #{tpu_custom_call.1} parent=5 // pred_region
        %s2511 = ssub.s32 %s16, 2
        // Predicated region
        $region57: #{tpu_custom_call.1} parent=55 // pred_check
          %p2512 = pneg %p197
        $region58: #{tpu_custom_call.1} parent=55 // pred_check_branch
          %2514 = sbr.rel (%p2512) target = $region60
        $region59: #{tpu_custom_call.1} parent=55 // pred_region
          %s2515 = sand.u32 %s182, 1
          %s2516 = scalar_lea.sflag [#allocation3], %s2515
          %s2517 = sand.u32 %s182, 1
          %s2518 = smul.addr %s2517, 256
          %s2519 = scalar_lea.vmem [#allocation2], %s2518
          %2520 = dma.done %s2516, 4096
        $region60: #{tpu_custom_call.1} parent=55 // pred_fallthru
          _
      $region56: #{tpu_custom_call.1} parent=5 // pred_fallthru
        _
    $region6: #{tpu_custom_call.1} parent=1 // loop_footer
      %s20 = sadd.s32 1, %s16
    $region7: #{tpu_custom_call.1} parent=1 // loop_footer_branch
      %15 = sbr.rel target = $region3
    $region8: #{tpu_custom_call.1} parent=1 // loop_exit
      _
    %2521 = vsyncpa [#allocation3], 1
    %s2522 = scalar_lea.sflag [#allocation3], 1
    %2523 = vsyncpa %s2522, 1

</llo_original>
